<compile_context>
chip_gen: v6e
topology: v6e:2x2x1
jax: 0.10.0
libtpu: 0.0.40
codegen_flags: <defaults>
</compile_context>

<pallas_src>
import jax
import jax.numpy as jnp
import numpy as np
from jax import lax
from jax.experimental import pallas as pl
from jax.experimental.pallas import tpu as pltpu

_PAD = 2  # per cascade level (5x5 "same" pool); applied 3x == maxpool13


# ------------------------- 5-wide separable window max ------------------------ #

def _win5_axis0(a):
    """Valid 5-wide running max along axis 0 via prefix doubling."""
    L = a.shape[0]
    w2 = jnp.maximum(a[: L - 1], a[1:])
    w4 = jnp.maximum(w2[: L - 3], w2[2 : L - 1])
    return jnp.maximum(w4[: L - 4], a[4:])


def _win5_axis1(a):
    """Valid 5-wide running max along axis 1 via prefix doubling."""
    L = a.shape[1]
    w2 = jnp.maximum(a[:, : L - 1], a[:, 1:])
    w4 = jnp.maximum(w2[:, : L - 3], w2[:, 2 : L - 1])
    return jnp.maximum(w4[:, : L - 4], a[:, 4:])


# ------------------------------ tiling heuristics ----------------------------- #

def _round_up(v, m):
    return (v + m - 1) // m * m


def _vmem_estimate(ct, H, W, itemsize):
    """Per-grid-step VMEM footprint incl. lane/sublane padding and temporaries."""
    lanes = _round_up(ct, 128)
    in_blk = H * _round_up(W, 8) * lanes
    out_blk = 4 * in_blk
    pad_blk = (H + 2 * _PAD) * _round_up(W + 2 * _PAD, 8) * lanes
    temps = 4 * pad_blk                       # w2/w4/p* live values of the cascade
    return itemsize * (2 * in_blk + 2 * out_blk + pad_blk + temps)


def _channel_tile(C, H, W, itemsize):
    if C % 128 != 0:
        # Correctness fallback for odd channel counts (low lane utilization).
        return C
    budget = 20 * 2**20
    if C % 256 == 0 and C // 256 >= 4 and _vmem_estimate(256, H, W, itemsize) <= budget:
        return 256
    # TODO(synk): add H-strip tiling (12-row overlapping halo) for very large H*W.
    return 128


# --------------------------------- fused kernel -------------------------------- #

def spp_pallas_nhwc(x):
    """Fused SPP on an NHWC tensor.

    Returns (N, 4, H, W, C) with branch order [maxpool13, maxpool9, maxpool5, x].
    No wrapper-side HBM passes: padding, all three pools and the identity copy
    happen in one pallas_call.
    """
    N, H, W, C = x.shape
    dtype = x.dtype
    itemsize = jnp.dtype(dtype).itemsize
    Ct = _channel_tile(C, H, W, itemsize)
    Hp, Wp = H + 2 * _PAD, W + 2 * _PAD
    neg = float("-inf") if jnp.issubdtype(dtype, jnp.floating) else int(jnp.iinfo(dtype).min)

    def kernel(x_ref, o_ref, pad_ref):
        # x_ref  : (1, H, W, Ct)     unpadded NHWC input block (C on lanes)
        # o_ref  : (1, 4, H, W, Ct)  branches in torch concat order
        # pad_ref: (Hp, Wp, Ct)      VMEM scratch, -inf border, reused per level
        x_blk = x_ref[0]
        pad_ref[...] = jnp.full((Hp, Wp, Ct), neg, dtype)

        def pool5_same(v):                       # == nn.MaxPool2d(5, 1, 2)
            pad_ref[_PAD:_PAD + H, _PAD:_PAD + W, :] = v
            return _win5_axis1(_win5_axis0(pad_ref[...]))

        p5 = pool5_same(x_blk)                   # maxpool5
        p9 = pool5_same(p5)                      # maxpool9  (= pool5 ∘ pool5)
        p13 = pool5_same(p9)                     # maxpool13 (= pool5 ∘ pool5 ∘ pool5)

        o_ref[0, 0] = p13
        o_ref[0, 1] = p9
        o_ref[0, 2] = p5
        o_ref[0, 3] = x_blk                      # identity branch, aligned copy

    vmem_limit = int(min(32 * 2**20,
                         max(8 * 2**20, 1.5 * _vmem_estimate(Ct, H, W, itemsize))))

    return pl.pallas_call(
        kernel,
        out_shape=jax.ShapeDtypeStruct((N, 4, H, W, C), dtype),
        grid=(N, C // Ct),
        in_specs=[pl.BlockSpec((1, H, W, Ct), lambda n, c: (n, 0, 0, c))],
        out_specs=pl.BlockSpec((1, 4, H, W, Ct), lambda n, c: (n, 0, 0, 0, c)),
        scratch_shapes=[pltpu.VMEM((Hp, Wp, Ct), dtype)],
        compiler_params=pltpu.CompilerParams(
            dimension_semantics=("parallel", "parallel"),
            vmem_limit_bytes=vmem_limit,
        ),
    )(x)


def spp_block_forward(x_nchw):
    """PyTorch-parity forward: (N, C, H, W) -> (N, 4C, H, W) = cat([p13, p9, p5, x], 1)."""
    N, C, H, W = x_nchw.shape
    x_nhwc = jnp.transpose(x_nchw, (0, 2, 3, 1))          # one layout pass in
    out5 = spp_pallas_nhwc(x_nhwc)                        # (N, 4, H, W, C)
    # one layout pass out: (N, 4, H, W, C) -> (N, 4, C, H, W) -> (N, 4C, H, W)
    return jnp.transpose(out5, (0, 1, 4, 2, 3)).reshape(N, 4 * C, H, W)


# ------------------------------ pure-JAX reference ------------------------------ #

def _ref_maxpool(x, k):
    p = k // 2
    return lax.reduce_window(x, -jnp.inf, lax.max,
                             (1, 1, k, k), (1, 1, 1, 1),
                             [(0, 0), (0, 0), (p, p), (p, p)])


def _reference_forward(x):
    return jnp.concatenate(
        [_ref_maxpool(x, 13), _ref_maxpool(x, 9), _ref_maxpool(x, 5), x], axis=1)


# -------------------------------------- main ------------------------------------- #

if __name__ == "__main__":
    key = jax.random.PRNGKey(0)
    N, C, H, W = 2, 4, 16, 16
    x = jax.random.normal(key, (N, C, H, W), jnp.float32)

    y = jax.block_until_ready(jax.jit(spp_block_forward)(x))

    y_ref = _reference_forward(x)
    np.testing.assert_allclose(np.asarray(y), np.asarray(y_ref), rtol=0.0, atol=0.0)
    assert y.shape == (N, 4 * C, H, W) and y.dtype == x.dtype

    print("KERNEL_OK")
</pallas_src>

<mosaic_0001>
module attributes {stable_mosaic.version = 11 : i64} {
  func.func @kernel(%arg0: i32, %arg1: i32, %arg2: memref<1x16x16x4xf32, #tpu.memory_space<vmem>>, %arg3: memref<1x4x16x16x4xf32, #tpu.memory_space<vmem>>, %arg4: memref<20x20x4xf32, #tpu.memory_space<vmem>>) attributes {dimension_semantics = [#tpu.dimension_semantics<parallel>, #tpu.dimension_semantics<parallel>], iteration_bounds = array<i64: 2, 1>, scalar_prefetch = 0 : i64, scratch_operands = 1 : i64, tpu.core_type = #tpu.core_type<tc>, window_params = [{transform_indices = @transform_0, window_bounds = array<i64: 1, 16, 16, 4>}, {transform_indices = @transform_1, window_bounds = array<i64: 1, 4, 16, 16, 4>}]} {
    %c0 = arith.constant 0 : index
    %c0_0 = arith.constant 0 : index
    %c0_1 = arith.constant 0 : index
    %c0_2 = arith.constant 0 : index
    %0 = vector.load %arg2[%c0, %c0_0, %c0_1, %c0_2] : memref<1x16x16x4xf32, #tpu.memory_space<vmem>>, vector<1x16x16x4xf32>
    %1 = vector.shape_cast %0 : vector<1x16x16x4xf32> to vector<16x16x4xf32>
    %cst = arith.constant 0xFF800000 : f32
    %2 = vector.broadcast %cst : f32 to vector<20x20x4xf32>
    %c0_3 = arith.constant 0 : index
    %c0_4 = arith.constant 0 : index
    %c0_5 = arith.constant 0 : index
    %3 = vector.load %arg4[%c0_3, %c0_4, %c0_5] : memref<20x20x4xf32, #tpu.memory_space<vmem>>, vector<20x20x4xf32>
    tpu.vector_store %arg4[%c0_3, %c0_4, %c0_5], %2 {strides = array<i32>} : memref<20x20x4xf32, #tpu.memory_space<vmem>>, vector<20x20x4xf32>,
    %c2 = arith.constant 2 : index
    %c2_6 = arith.constant 2 : index
    %c0_7 = arith.constant 0 : index
    %4 = vector.load %arg4[%c2, %c2_6, %c0_7] : memref<20x20x4xf32, #tpu.memory_space<vmem>>, vector<16x16x4xf32>
    tpu.vector_store %arg4[%c2, %c2_6, %c0_7], %1 {strides = array<i32>} : memref<20x20x4xf32, #tpu.memory_space<vmem>>, vector<16x16x4xf32>,
    %c0_8 = arith.constant 0 : index
    %c0_9 = arith.constant 0 : index
    %c0_10 = arith.constant 0 : index
    %5 = vector.load %arg4[%c0_8, %c0_9, %c0_10] : memref<20x20x4xf32, #tpu.memory_space<vmem>>, vector<20x20x4xf32>
    %6 = vector.extract_strided_slice %5 {offsets = [0, 0, 0], sizes = [19, 20, 4], strides = [1, 1, 1]} : vector<20x20x4xf32> to vector<19x20x4xf32>
    %7 = vector.extract_strided_slice %5 {offsets = [1, 0, 0], sizes = [19, 20, 4], strides = [1, 1, 1]} : vector<20x20x4xf32> to vector<19x20x4xf32>
    %8 = arith.maximumf %6, %7 : vector<19x20x4xf32>
    %9 = vector.extract_strided_slice %8 {offsets = [0, 0, 0], sizes = [17, 20, 4], strides = [1, 1, 1]} : vector<19x20x4xf32> to vector<17x20x4xf32>
    %10 = vector.extract_strided_slice %8 {offsets = [2, 0, 0], sizes = [17, 20, 4], strides = [1, 1, 1]} : vector<19x20x4xf32> to vector<17x20x4xf32>
    %11 = arith.maximumf %9, %10 : vector<17x20x4xf32>
    %12 = vector.extract_strided_slice %11 {offsets = [0, 0, 0], sizes = [16, 20, 4], strides = [1, 1, 1]} : vector<17x20x4xf32> to vector<16x20x4xf32>
    %13 = vector.extract_strided_slice %5 {offsets = [4, 0, 0], sizes = [16, 20, 4], strides = [1, 1, 1]} : vector<20x20x4xf32> to vector<16x20x4xf32>
    %14 = arith.maximumf %12, %13 : vector<16x20x4xf32>
    %15 = vector.extract_strided_slice %14 {offsets = [0, 0, 0], sizes = [16, 19, 4], strides = [1, 1, 1]} : vector<16x20x4xf32> to vector<16x19x4xf32>
    %16 = vector.extract_strided_slice %14 {offsets = [0, 1, 0], sizes = [16, 19, 4], strides = [1, 1, 1]} : vector<16x20x4xf32> to vector<16x19x4xf32>
    %17 = arith.maximumf %15, %16 : vector<16x19x4xf32>
    %18 = vector.extract_strided_slice %17 {offsets = [0, 0, 0], sizes = [16, 17, 4], strides = [1, 1, 1]} : vector<16x19x4xf32> to vector<16x17x4xf32>
    %19 = vector.extract_strided_slice %17 {offsets = [0, 2, 0], sizes = [16, 17, 4], strides = [1, 1, 1]} : vector<16x19x4xf32> to vector<16x17x4xf32>
    %20 = arith.maximumf %18, %19 : vector<16x17x4xf32>
    %21 = vector.extract_strided_slice %20 {offsets = [0, 0, 0], sizes = [16, 16, 4], strides = [1, 1, 1]} : vector<16x17x4xf32> to vector<16x16x4xf32>
    %22 = vector.extract_strided_slice %14 {offsets = [0, 4, 0], sizes = [16, 16, 4], strides = [1, 1, 1]} : vector<16x20x4xf32> to vector<16x16x4xf32>
    %23 = arith.maximumf %21, %22 : vector<16x16x4xf32>
    %c2_11 = arith.constant 2 : index
    %c2_12 = arith.constant 2 : index
    %c0_13 = arith.constant 0 : index
    %24 = vector.load %arg4[%c2_11, %c2_12, %c0_13] : memref<20x20x4xf32, #tpu.memory_space<vmem>>, vector<16x16x4xf32>
    tpu.vector_store %arg4[%c2_11, %c2_12, %c0_13], %23 {strides = array<i32>} : memref<20x20x4xf32, #tpu.memory_space<vmem>>, vector<16x16x4xf32>,
    %c0_14 = arith.constant 0 : index
    %c0_15 = arith.constant 0 : index
    %c0_16 = arith.constant 0 : index
    %25 = vector.load %arg4[%c0_14, %c0_15, %c0_16] : memref<20x20x4xf32, #tpu.memory_space<vmem>>, vector<20x20x4xf32>
    %26 = vector.extract_strided_slice %25 {offsets = [0, 0, 0], sizes = [19, 20, 4], strides = [1, 1, 1]} : vector<20x20x4xf32> to vector<19x20x4xf32>
    %27 = vector.extract_strided_slice %25 {offsets = [1, 0, 0], sizes = [19, 20, 4], strides = [1, 1, 1]} : vector<20x20x4xf32> to vector<19x20x4xf32>
    %28 = arith.maximumf %26, %27 : vector<19x20x4xf32>
    %29 = vector.extract_strided_slice %28 {offsets = [0, 0, 0], sizes = [17, 20, 4], strides = [1, 1, 1]} : vector<19x20x4xf32> to vector<17x20x4xf32>
    %30 = vector.extract_strided_slice %28 {offsets = [2, 0, 0], sizes = [17, 20, 4], strides = [1, 1, 1]} : vector<19x20x4xf32> to vector<17x20x4xf32>
    %31 = arith.maximumf %29, %30 : vector<17x20x4xf32>
    %32 = vector.extract_strided_slice %31 {offsets = [0, 0, 0], sizes = [16, 20, 4], strides = [1, 1, 1]} : vector<17x20x4xf32> to vector<16x20x4xf32>
    %33 = vector.extract_strided_slice %25 {offsets = [4, 0, 0], sizes = [16, 20, 4], strides = [1, 1, 1]} : vector<20x20x4xf32> to vector<16x20x4xf32>
    %34 = arith.maximumf %32, %33 : vector<16x20x4xf32>
    %35 = vector.extract_strided_slice %34 {offsets = [0, 0, 0], sizes = [16, 19, 4], strides = [1, 1, 1]} : vector<16x20x4xf32> to vector<16x19x4xf32>
    %36 = vector.extract_strided_slice %34 {offsets = [0, 1, 0], sizes = [16, 19, 4], strides = [1, 1, 1]} : vector<16x20x4xf32> to vector<16x19x4xf32>
    %37 = arith.maximumf %35, %36 : vector<16x19x4xf32>
    %38 = vector.extract_strided_slice %37 {offsets = [0, 0, 0], sizes = [16, 17, 4], strides = [1, 1, 1]} : vector<16x19x4xf32> to vector<16x17x4xf32>
    %39 = vector.extract_strided_slice %37 {offsets = [0, 2, 0], sizes = [16, 17, 4], strides = [1, 1, 1]} : vector<16x19x4xf32> to vector<16x17x4xf32>
    %40 = arith.maximumf %38, %39 : vector<16x17x4xf32>
    %41 = vector.extract_strided_slice %40 {offsets = [0, 0, 0], sizes = [16, 16, 4], strides = [1, 1, 1]} : vector<16x17x4xf32> to vector<16x16x4xf32>
    %42 = vector.extract_strided_slice %34 {offsets = [0, 4, 0], sizes = [16, 16, 4], strides = [1, 1, 1]} : vector<16x20x4xf32> to vector<16x16x4xf32>
    %43 = arith.maximumf %41, %42 : vector<16x16x4xf32>
    %c2_17 = arith.constant 2 : index
    %c2_18 = arith.constant 2 : index
    %c0_19 = arith.constant 0 : index
    %44 = vector.load %arg4[%c2_17, %c2_18, %c0_19] : memref<20x20x4xf32, #tpu.memory_space<vmem>>, vector<16x16x4xf32>
    tpu.vector_store %arg4[%c2_17, %c2_18, %c0_19], %43 {strides = array<i32>} : memref<20x20x4xf32, #tpu.memory_space<vmem>>, vector<16x16x4xf32>,
    %c0_20 = arith.constant 0 : index
    %c0_21 = arith.constant 0 : index
    %c0_22 = arith.constant 0 : index
    %45 = vector.load %arg4[%c0_20, %c0_21, %c0_22] : memref<20x20x4xf32, #tpu.memory_space<vmem>>, vector<20x20x4xf32>
    %46 = vector.extract_strided_slice %45 {offsets = [0, 0, 0], sizes = [19, 20, 4], strides = [1, 1, 1]} : vector<20x20x4xf32> to vector<19x20x4xf32>
    %47 = vector.extract_strided_slice %45 {offsets = [1, 0, 0], sizes = [19, 20, 4], strides = [1, 1, 1]} : vector<20x20x4xf32> to vector<19x20x4xf32>
    %48 = arith.maximumf %46, %47 : vector<19x20x4xf32>
    %49 = vector.extract_strided_slice %48 {offsets = [0, 0, 0], sizes = [17, 20, 4], strides = [1, 1, 1]} : vector<19x20x4xf32> to vector<17x20x4xf32>
    %50 = vector.extract_strided_slice %48 {offsets = [2, 0, 0], sizes = [17, 20, 4], strides = [1, 1, 1]} : vector<19x20x4xf32> to vector<17x20x4xf32>
    %51 = arith.maximumf %49, %50 : vector<17x20x4xf32>
    %52 = vector.extract_strided_slice %51 {offsets = [0, 0, 0], sizes = [16, 20, 4], strides = [1, 1, 1]} : vector<17x20x4xf32> to vector<16x20x4xf32>
    %53 = vector.extract_strided_slice %45 {offsets = [4, 0, 0], sizes = [16, 20, 4], strides = [1, 1, 1]} : vector<20x20x4xf32> to vector<16x20x4xf32>
    %54 = arith.maximumf %52, %53 : vector<16x20x4xf32>
    %55 = vector.extract_strided_slice %54 {offsets = [0, 0, 0], sizes = [16, 19, 4], strides = [1, 1, 1]} : vector<16x20x4xf32> to vector<16x19x4xf32>
    %56 = vector.extract_strided_slice %54 {offsets = [0, 1, 0], sizes = [16, 19, 4], strides = [1, 1, 1]} : vector<16x20x4xf32> to vector<16x19x4xf32>
    %57 = arith.maximumf %55, %56 : vector<16x19x4xf32>
    %58 = vector.extract_strided_slice %57 {offsets = [0, 0, 0], sizes = [16, 17, 4], strides = [1, 1, 1]} : vector<16x19x4xf32> to vector<16x17x4xf32>
    %59 = vector.extract_strided_slice %57 {offsets = [0, 2, 0], sizes = [16, 17, 4], strides = [1, 1, 1]} : vector<16x19x4xf32> to vector<16x17x4xf32>
    %60 = arith.maximumf %58, %59 : vector<16x17x4xf32>
    %61 = vector.extract_strided_slice %60 {offsets = [0, 0, 0], sizes = [16, 16, 4], strides = [1, 1, 1]} : vector<16x17x4xf32> to vector<16x16x4xf32>
    %62 = vector.extract_strided_slice %54 {offsets = [0, 4, 0], sizes = [16, 16, 4], strides = [1, 1, 1]} : vector<16x20x4xf32> to vector<16x16x4xf32>
    %63 = arith.maximumf %61, %62 : vector<16x16x4xf32>
    %c0_23 = arith.constant 0 : index
    %c0_24 = arith.constant 0 : index
    %c0_25 = arith.constant 0 : index
    %c0_26 = arith.constant 0 : index
    %c0_27 = arith.constant 0 : index
    %64 = vector.load %arg3[%c0_23, %c0_24, %c0_25, %c0_26, %c0_27] : memref<1x4x16x16x4xf32, #tpu.memory_space<vmem>>, vector<1x1x16x16x4xf32>
    %65 = vector.shape_cast %64 : vector<1x1x16x16x4xf32> to vector<16x16x4xf32>
    %66 = vector.shape_cast %63 : vector<16x16x4xf32> to vector<1x1x16x16x4xf32>
    tpu.vector_store %arg3[%c0_23, %c0_24, %c0_25, %c0_26, %c0_27], %66 {strides = array<i32>} : memref<1x4x16x16x4xf32, #tpu.memory_space<vmem>>, vector<1x1x16x16x4xf32>,
    %c0_28 = arith.constant 0 : index
    %c1 = arith.constant 1 : index
    %c0_29 = arith.constant 0 : index
    %c0_30 = arith.constant 0 : index
    %c0_31 = arith.constant 0 : index
    %67 = vector.load %arg3[%c0_28, %c1, %c0_29, %c0_30, %c0_31] : memref<1x4x16x16x4xf32, #tpu.memory_space<vmem>>, vector<1x1x16x16x4xf32>
    %68 = vector.shape_cast %67 : vector<1x1x16x16x4xf32> to vector<16x16x4xf32>
    %69 = vector.shape_cast %43 : vector<16x16x4xf32> to vector<1x1x16x16x4xf32>
    tpu.vector_store %arg3[%c0_28, %c1, %c0_29, %c0_30, %c0_31], %69 {strides = array<i32>} : memref<1x4x16x16x4xf32, #tpu.memory_space<vmem>>, vector<1x1x16x16x4xf32>,
    %c0_32 = arith.constant 0 : index
    %c2_33 = arith.constant 2 : index
    %c0_34 = arith.constant 0 : index
    %c0_35 = arith.constant 0 : index
    %c0_36 = arith.constant 0 : index
    %70 = vector.load %arg3[%c0_32, %c2_33, %c0_34, %c0_35, %c0_36] : memref<1x4x16x16x4xf32, #tpu.memory_space<vmem>>, vector<1x1x16x16x4xf32>
    %71 = vector.shape_cast %70 : vector<1x1x16x16x4xf32> to vector<16x16x4xf32>
    %72 = vector.shape_cast %23 : vector<16x16x4xf32> to vector<1x1x16x16x4xf32>
    tpu.vector_store %arg3[%c0_32, %c2_33, %c0_34, %c0_35, %c0_36], %72 {strides = array<i32>} : memref<1x4x16x16x4xf32, #tpu.memory_space<vmem>>, vector<1x1x16x16x4xf32>,
    %c0_37 = arith.constant 0 : index
    %c3 = arith.constant 3 : index
    %c0_38 = arith.constant 0 : index
    %c0_39 = arith.constant 0 : index
    %c0_40 = arith.constant 0 : index
    %73 = vector.load %arg3[%c0_37, %c3, %c0_38, %c0_39, %c0_40] : memref<1x4x16x16x4xf32, #tpu.memory_space<vmem>>, vector<1x1x16x16x4xf32>
    %74 = vector.shape_cast %73 : vector<1x1x16x16x4xf32> to vector<16x16x4xf32>
    %75 = vector.shape_cast %1 : vector<16x16x4xf32> to vector<1x1x16x16x4xf32>
    tpu.vector_store %arg3[%c0_37, %c3, %c0_38, %c0_39, %c0_40], %75 {strides = array<i32>} : memref<1x4x16x16x4xf32, #tpu.memory_space<vmem>>, vector<1x1x16x16x4xf32>,
    return
  }
  func.func @transform_0(%arg0: i32, %arg1: i32) -> (i32, i32, i32, i32) {
    %c0_i32 = arith.constant 0 : i32
    %c0_i32_0 = arith.constant 0 : i32
    %c0_i32_1 = arith.constant 0 : i32
    return %arg0, %c0_i32, %c0_i32_0, %arg1 : i32, i32, i32, i32
  }
  func.func @transform_1(%arg0: i32, %arg1: i32) -> (i32, i32, i32, i32, i32) {
    %c0_i32 = arith.constant 0 : i32
    %c0_i32_0 = arith.constant 0 : i32
    %c0_i32_1 = arith.constant 0 : i32
    %c0_i32_2 = arith.constant 0 : i32
    return %arg0, %c0_i32, %c0_i32_0, %c0_i32_1, %arg1 : i32, i32, i32, i32, i32
  }
}

</mosaic_0001>

<llo_original>
// kernel: spp_block_forward.1
$region0: #{spp_block_forward.1}
  #allocation0 [shape = 'u32[]', space=smem, size = 0x4, offset = 0x4, fixed_abs, tag = 'smem constant byte address 0x4 - core index']
  #allocation1 [shape = 'u32[144,128]{1,0:T(1,128)}', space=vmem, size = 0x12000, scoped, tag = 'internal scratch']
  #allocation2 [shape = 'f32[20,20,4]{2,1,0:T(8,128)}', space=vmem, size = 0x3c000, scoped, tag = 'scratch operand']
  %s0 = inlined_call_operand.vmem [shape: f32[2,16,16,4], index: 0, kind: input, shape index: {}]
  %s1 = inlined_call_operand.vmem [shape: f32[2,4,16,16,4], index: 1, kind: output, shape index: {}]
  %s2 = sld [smem:[#allocation0]]
  $region37: #{spp_block_forward.1} parent=0
    _
  %s4 = ssub.s32 1, %s2
  %s5 = scalar_select 0, %s4, %s2
  loop: start=0, step=1, limit=4
  $region2: #{spp_block_forward.1} parent=0 // loop_pre_header
    _
  $region3: #{spp_block_forward.1} parent=0 // loop_header
    %s7 = sphi 0, %s11
    %p8 = scmp.ge.s32.totalorder %s7, 4
    %s14 = sphi 0, %s26
    %s15 = sphi 0, %s22
    %s16 = sphi 0, %s14
    %s17 = sphi 0, %s15
    %s18 = sphi 0, %s16
    %s19 = sphi 0, %s17
    %s31 = sphi 0, %s33
    %s34 = sphi 0, %s31
    %s35 = sphi 0, %s34
    %s51 = sphi 0, %s35
    %s59 = sphi 0, %s61
    %s62 = sphi 0, %s59
    %s63 = sphi 0, %s62
    %s79 = sphi 0, %s63
  $region4: #{spp_block_forward.1} parent=0 // loop_header_branch
    %10 = sbr.rel (%p8) target = $region8
  $region5: #{spp_block_forward.1} parent=0 // loop_body
    %s12 = ssub.s32 %s7, 1
    %s13 = ssub.s32 %s7, 2
    %s20 = sadd.s32 1, %s15
    %p21 = scmp.ge.s32.totalorder %s20, 1
    %s22 = scalar_select %p21, 0, %s20
    %s23 = sadd.s32 1, %s14
    %s24 = scalar_select %p21, %s23, %s14
    %p25 = scmp.ge.s32.totalorder %s24, 2
    %s26 = scalar_select %p25, 0, %s24
    %s27 = ssub.s32 %s14, %s26
    %s28 = ssub.s32 %s15, %s22
    %s29 = sor.u32 %s27, %s28
    %p30 = scmp.eq.s32.totalorder %s29, 0
    %s32 = sadd.s32 %s31, 1
    %s33 = scalar_select %p30, %s31, %s32
    %p36 = pneg %p30
    %p37 = scmp.eq.s32.totalorder %s7, 1
    %p38 = por %p36, %p37
    %p39 = scmp.ne.s32.totalorder %s31, %s34
    %p40 = scmp.eq.s32.totalorder %s7, 0
    %p41 = por %p39, %p40
    %p42 = scmp.ne.s32.totalorder %s31, %s34
    %p43 = scmp.eq.s32.totalorder %s12, 1
    %p44 = por %p42, %p43
    %p45 = scmp.ne.s32.totalorder %s34, %s35
    %p46 = scmp.eq.s32.totalorder %s12, 0
    %p47 = por %p45, %p46
    %p48 = scmp.ne.s32.totalorder %s34, %s35
    %p49 = scmp.eq.s32.totalorder %s13, 1
    %p50 = por %p48, %p49
    %p52 = scmp.ne.s32.totalorder %s35, %s51
    %p53 = scmp.eq.s32.totalorder %s13, 0
    %p54 = por %p52, %p53
    %s55 = ssub.s32 %s14, %s26
    %s56 = ssub.s32 %s15, %s22
    %s57 = sor.u32 %s55, %s56
    %p58 = scmp.eq.s32.totalorder %s57, 0
    %s60 = sadd.s32 %s59, 1
    %s61 = scalar_select %p58, %s59, %s60
    %p64 = pneg %p58
    %p65 = scmp.eq.s32.totalorder %s7, 1
    %p66 = por %p64, %p65
    %p67 = scmp.ne.s32.totalorder %s59, %s62
    %p68 = scmp.eq.s32.totalorder %s7, 0
    %p69 = por %p67, %p68
    %p70 = scmp.ne.s32.totalorder %s59, %s62
    %p71 = scmp.eq.s32.totalorder %s12, 1
    %p72 = por %p70, %p71
    %p73 = scmp.ne.s32.totalorder %s62, %s63
    %p74 = scmp.eq.s32.totalorder %s12, 0
    %p75 = por %p73, %p74
    %p76 = scmp.ne.s32.totalorder %s62, %s63
    %p77 = scmp.eq.s32.totalorder %s13, 1
    %p78 = por %p76, %p77
    %p80 = scmp.ne.s32.totalorder %s63, %s79
    %p81 = scmp.eq.s32.totalorder %s13, 0
    %p82 = por %p80, %p81
    %p83 = scmp.le.s32.totalorder 1, %s7
    %p84 = scmp.lt.s32.totalorder %s7, 3
    %p85 = pnand %p83, %p84
    %p86 = pneg %p85
    // Predicated region
    $region9: #{spp_block_forward.1} parent=5 // pred_check
      _
    $region10: #{spp_block_forward.1} parent=5 // pred_check_branch
      %88 = sbr.rel (%p85) target = $region12
    $region11: #{spp_block_forward.1} parent=5 // pred_region
      %s89 = ssub.s32 %s7, 1
    $region12: #{spp_block_forward.1} parent=5 // pred_fallthru
      _
    %p90 = scmp.lt.s32.totalorder %s7, 2
    // Predicated region
    $region13: #{spp_block_forward.1} parent=5 // pred_check
      %p91 = pneg %p90
    $region14: #{spp_block_forward.1} parent=5 // pred_check_branch
      %93 = sbr.rel (%p91) target = $region16
    $region15: #{spp_block_forward.1} parent=5 // pred_region
      // Predicated region
      $region17: #{spp_block_forward.1} parent=15 // pred_check
        %p94 = pneg %p41
      $region18: #{spp_block_forward.1} parent=15 // pred_check_branch
        %96 = sbr.rel (%p94) target = $region20
      $region19: #{spp_block_forward.1} parent=15 // pred_region
        %p97 = scmp.lt.s32.totalorder %s14, 1
        %s98 = scalar_select %p97, %s14, 1
        %p99 = scmp.lt.s32.totalorder %s15, 0
        %s100 = scalar_select %p99, %s15, 0
        %s101 = smul.addr %s98, 32
        %s102 = sadd.s32 %s100, %s101
        %s103 = smul.addr %s102, 8
        %s104 = scalar_lea.vmem %s0, %s103
      $region20: #{spp_block_forward.1} parent=15 // pred_fallthru
        _
    $region16: #{spp_block_forward.1} parent=5 // pred_fallthru
      _
    %p105 = scmp.le.s32.totalorder 1, %s7
    %p106 = scmp.lt.s32.totalorder %s7, 3
    %p107 = pnand %p105, %p106
    %p108 = pneg %p107
    // Predicated region
    $region21: #{spp_block_forward.1} parent=5 // pred_check
      _
    $region22: #{spp_block_forward.1} parent=5 // pred_check_branch
      %110 = sbr.rel (%p107) target = $region24
    $region23: #{spp_block_forward.1} parent=5 // pred_region
      %s111 = ssub.s32 %s7, 1
      %p112 = scmp.lt.s32.totalorder %s16, 1
      %s113 = scalar_select %p112, %s16, 1
      %p114 = scmp.lt.s32.totalorder %s17, 0
      %s115 = scalar_select %p114, %s17, 0
      %s116 = smul.addr %s113, 32
      %s117 = sadd.s32 %s115, %s116
      %s118 = smul.addr %s117, 8
      %s119 = scalar_lea.vmem %s0, %s118
      %p120 = pneg %p47
      %p121 = pneg %p44
      %p122 = pneg %p75
      %p123 = pneg %p72
      %p124 = scmp.lt.s32.totalorder %s16, 1
      %s125 = scalar_select %p124, %s16, 1
      %p126 = scmp.lt.s32.totalorder %s17, 0
      %s127 = scalar_select %p126, %s17, 0
      %s128 = smul.addr %s125, 128
      %s129 = sadd.s32 %s127, %s128
      %s130 = smul.addr %s129, 8
      %s131 = scalar_lea.vmem %s1, %s130
      %p132 = scmp.lt.s32.totalorder %s16, 1
      %s133 = scalar_select %p132, %s16, 1
      %p134 = scmp.lt.s32.totalorder %s17, 0
      %s135 = scalar_select %p134, %s17, 0
      %s136 = smul.addr %s133, 32
      %s137 = sadd.s32 %s135, %s136
      %s138 = smul.addr %s137, 8
      %s139 = scalar_lea.vmem %s0, %s138
      %p140 = scmp.lt.s32.totalorder %s16, 1
      %s141 = scalar_select %p140, %s16, 1
      %p142 = scmp.lt.s32.totalorder %s17, 0
      %s143 = scalar_select %p142, %s17, 0
      %s144 = smul.addr %s141, 128
      %s145 = sadd.s32 %s143, %s144
      %s146 = smul.addr %s145, 8
      %s147 = scalar_lea.vmem %s1, %s146
      %v148 = vld [vmem:[%s139] sm:$0xff]
      %v149 = vld [vmem:[%s139 + $0x8] sm:$0xff]
      %v150 = vld [vmem:[%s139 + $0x10] sm:$0xff]
      %v151 = vld [vmem:[%s139 + $0x18] sm:$0xff]
      %v152 = vld [vmem:[%s139 + $0x20] sm:$0xff]
      %v153 = vld [vmem:[%s139 + $0x28] sm:$0xff]
      %v154 = vld [vmem:[%s139 + $0x30] sm:$0xff]
      %v155 = vld [vmem:[%s139 + $0x38] sm:$0xff]
      %v156 = vld [vmem:[%s139 + $0x40] sm:$0xff]
      %v157 = vld [vmem:[%s139 + $0x48] sm:$0xff]
      %v158 = vld [vmem:[%s139 + $0x50] sm:$0xff]
      %v159 = vld [vmem:[%s139 + $0x58] sm:$0xff]
      %v160 = vld [vmem:[%s139 + $0x60] sm:$0xff]
      %v161 = vld [vmem:[%s139 + $0x68] sm:$0xff]
      %v162 = vld [vmem:[%s139 + $0x70] sm:$0xff]
      %v163 = vld [vmem:[%s139 + $0x78] sm:$0xff]
      %v164 = vld [vmem:[%s139 + $0x80] sm:$0xff]
      %v165 = vld [vmem:[%s139 + $0x88] sm:$0xff]
      %v166 = vld [vmem:[%s139 + $0x90] sm:$0xff]
      %v167 = vld [vmem:[%s139 + $0x98] sm:$0xff]
      %v168 = vld [vmem:[%s139 + $0xa0] sm:$0xff]
      %v169 = vld [vmem:[%s139 + $0xa8] sm:$0xff]
      %v170 = vld [vmem:[%s139 + $0xb0] sm:$0xff]
      %v171 = vld [vmem:[%s139 + $0xb8] sm:$0xff]
      %v172 = vld [vmem:[%s139 + $0xc0] sm:$0xff]
      %v173 = vld [vmem:[%s139 + $0xc8] sm:$0xff]
      %v174 = vld [vmem:[%s139 + $0xd0] sm:$0xff]
      %v175 = vld [vmem:[%s139 + $0xd8] sm:$0xff]
      %v176 = vld [vmem:[%s139 + $0xe0] sm:$0xff]
      %v177 = vld [vmem:[%s139 + $0xe8] sm:$0xff]
      %v178 = vld [vmem:[%s139 + $0xf0] sm:$0xff]
      %v179 = vld [vmem:[%s139 + $0xf8] sm:$0xff]
      %vm180 = vcmask 31744
      %181 = vst.msk [vmem:[#allocation2] sm:$0xff] %vm180, -inf
      %182 = vst.msk [vmem:[#allocation2 + $0x8] sm:$0xff] %vm180, -inf
      %vm183 = vcmask 27648
      %184 = vst.msk [vmem:[#allocation2 + $0x10] sm:$0xf] %vm183, -inf
      %185 = vst.msk [vmem:[#allocation2 + $0x18] sm:$0xff] %vm180, -inf
      %186 = vst.msk [vmem:[#allocation2 + $0x20] sm:$0xff] %vm180, -inf
      %187 = vst.msk [vmem:[#allocation2 + $0x28] sm:$0xf] %vm183, -inf
      %188 = vst.msk [vmem:[#allocation2 + $0x30] sm:$0xff] %vm180, -inf
      %189 = vst.msk [vmem:[#allocation2 + $0x38] sm:$0xff] %vm180, -inf
      %190 = vst.msk [vmem:[#allocation2 + $0x40] sm:$0xf] %vm183, -inf
      %191 = vst.msk [vmem:[#allocation2 + $0x48] sm:$0xff] %vm180, -inf
      %192 = vst.msk [vmem:[#allocation2 + $0x50] sm:$0xff] %vm180, -inf
      %193 = vst.msk [vmem:[#allocation2 + $0x58] sm:$0xf] %vm183, -inf
      %194 = vst.msk [vmem:[#allocation2 + $0x60] sm:$0xff] %vm180, -inf
      %195 = vst.msk [vmem:[#allocation2 + $0x68] sm:$0xff] %vm180, -inf
      %196 = vst.msk [vmem:[#allocation2 + $0x70] sm:$0xf] %vm183, -inf
      %197 = vst.msk [vmem:[#allocation2 + $0x78] sm:$0xff] %vm180, -inf
      %198 = vst.msk [vmem:[#allocation2 + $0x80] sm:$0xff] %vm180, -inf
      %199 = vst.msk [vmem:[#allocation2 + $0x88] sm:$0xf] %vm183, -inf
      %200 = vst.msk [vmem:[#allocation2 + $0x90] sm:$0xff] %vm180, -inf
      %201 = vst.msk [vmem:[#allocation2 + $0x98] sm:$0xff] %vm180, -inf
      %202 = vst.msk [vmem:[#allocation2 + $0xa0] sm:$0xf] %vm183, -inf
      %203 = vst.msk [vmem:[#allocation2 + $0xa8] sm:$0xff] %vm180, -inf
      %204 = vst.msk [vmem:[#allocation2 + $0xb0] sm:$0xff] %vm180, -inf
      %205 = vst.msk [vmem:[#allocation2 + $0xb8] sm:$0xf] %vm183, -inf
      %206 = vst.msk [vmem:[#allocation2 + $0xc0] sm:$0xff] %vm180, -inf
      %207 = vst.msk [vmem:[#allocation2 + $0xc8] sm:$0xff] %vm180, -inf
      %208 = vst.msk [vmem:[#allocation2 + $0xd0] sm:$0xf] %vm183, -inf
      %209 = vst.msk [vmem:[#allocation2 + $0xd8] sm:$0xff] %vm180, -inf
      %210 = vst.msk [vmem:[#allocation2 + $0xe0] sm:$0xff] %vm180, -inf
      %211 = vst.msk [vmem:[#allocation2 + $0xe8] sm:$0xf] %vm183, -inf
      %212 = vst.msk [vmem:[#allocation2 + $0xf0] sm:$0xff] %vm180, -inf
      %213 = vst.msk [vmem:[#allocation2 + $0xf8] sm:$0xff] %vm180, -inf
      %214 = vst.msk [vmem:[#allocation2 + $0x100] sm:$0xf] %vm183, -inf
      %215 = vst.msk [vmem:[#allocation2 + $0x108] sm:$0xff] %vm180, -inf
      %216 = vst.msk [vmem:[#allocation2 + $0x110] sm:$0xff] %vm180, -inf
      %217 = vst.msk [vmem:[#allocation2 + $0x118] sm:$0xf] %vm183, -inf
      %218 = vst.msk [vmem:[#allocation2 + $0x120] sm:$0xff] %vm180, -inf
      %219 = vst.msk [vmem:[#allocation2 + $0x128] sm:$0xff] %vm180, -inf
      %220 = vst.msk [vmem:[#allocation2 + $0x130] sm:$0xf] %vm183, -inf
      %221 = vst.msk [vmem:[#allocation2 + $0x138] sm:$0xff] %vm180, -inf
      %222 = vst.msk [vmem:[#allocation2 + $0x140] sm:$0xff] %vm180, -inf
      %223 = vst.msk [vmem:[#allocation2 + $0x148] sm:$0xf] %vm183, -inf
      %224 = vst.msk [vmem:[#allocation2 + $0x150] sm:$0xff] %vm180, -inf
      %225 = vst.msk [vmem:[#allocation2 + $0x158] sm:$0xff] %vm180, -inf
      %226 = vst.msk [vmem:[#allocation2 + $0x160] sm:$0xf] %vm183, -inf
      %227 = vst.msk [vmem:[#allocation2 + $0x168] sm:$0xff] %vm180, -inf
      %228 = vst.msk [vmem:[#allocation2 + $0x170] sm:$0xff] %vm180, -inf
      %229 = vst.msk [vmem:[#allocation2 + $0x178] sm:$0xf] %vm183, -inf
      %230 = vst.msk [vmem:[#allocation2 + $0x180] sm:$0xff] %vm180, -inf
      %231 = vst.msk [vmem:[#allocation2 + $0x188] sm:$0xff] %vm180, -inf
      %232 = vst.msk [vmem:[#allocation2 + $0x190] sm:$0xf] %vm183, -inf
      %233 = vst.msk [vmem:[#allocation2 + $0x198] sm:$0xff] %vm180, -inf
      %234 = vst.msk [vmem:[#allocation2 + $0x1a0] sm:$0xff] %vm180, -inf
      %235 = vst.msk [vmem:[#allocation2 + $0x1a8] sm:$0xf] %vm183, -inf
      %236 = vst.msk [vmem:[#allocation2 + $0x1b0] sm:$0xff] %vm180, -inf
      %237 = vst.msk [vmem:[#allocation2 + $0x1b8] sm:$0xff] %vm180, -inf
      %238 = vst.msk [vmem:[#allocation2 + $0x1c0] sm:$0xf] %vm183, -inf
      %239 = vst.msk [vmem:[#allocation2 + $0x1c8] sm:$0xff] %vm180, -inf
      %240 = vst.msk [vmem:[#allocation2 + $0x1d0] sm:$0xff] %vm180, -inf
      %241 = vst.msk [vmem:[#allocation2 + $0x1d8] sm:$0xf] %vm183, -inf
      %s242 = scalar_lea.vmem [#allocation2], 48
      %243 = vst.msk [vmem:[%s242 + $0x2] sm:$0xff] %vm180, %v148
      %244 = vst.msk [vmem:[%s242 + $0xa] sm:$0xff] %vm180, %v149
      %245 = vst.msk [vmem:[%s242 + $0x1a] sm:$0xff] %vm180, %v150
      %246 = vst.msk [vmem:[%s242 + $0x22] sm:$0xff] %vm180, %v151
      %247 = vst.msk [vmem:[%s242 + $0x32] sm:$0xff] %vm180, %v152
      %248 = vst.msk [vmem:[%s242 + $0x3a] sm:$0xff] %vm180, %v153
      %249 = vst.msk [vmem:[%s242 + $0x4a] sm:$0xff] %vm180, %v154
      %250 = vst.msk [vmem:[%s242 + $0x52] sm:$0xff] %vm180, %v155
      %251 = vst.msk [vmem:[%s242 + $0x62] sm:$0xff] %vm180, %v156
      %252 = vst.msk [vmem:[%s242 + $0x6a] sm:$0xff] %vm180, %v157
      %253 = vst.msk [vmem:[%s242 + $0x7a] sm:$0xff] %vm180, %v158
      %254 = vst.msk [vmem:[%s242 + $0x82] sm:$0xff] %vm180, %v159
      %255 = vst.msk [vmem:[%s242 + $0x92] sm:$0xff] %vm180, %v160
      %256 = vst.msk [vmem:[%s242 + $0x9a] sm:$0xff] %vm180, %v161
      %257 = vst.msk [vmem:[%s242 + $0xaa] sm:$0xff] %vm180, %v162
      %258 = vst.msk [vmem:[%s242 + $0xb2] sm:$0xff] %vm180, %v163
      %259 = vst.msk [vmem:[%s242 + $0xc2] sm:$0xff] %vm180, %v164
      %260 = vst.msk [vmem:[%s242 + $0xca] sm:$0xff] %vm180, %v165
      %261 = vst.msk [vmem:[%s242 + $0xda] sm:$0xff] %vm180, %v166
      %262 = vst.msk [vmem:[%s242 + $0xe2] sm:$0xff] %vm180, %v167
      %263 = vst.msk [vmem:[%s242 + $0xf2] sm:$0xff] %vm180, %v168
      %264 = vst.msk [vmem:[%s242 + $0xfa] sm:$0xff] %vm180, %v169
      %265 = vst.msk [vmem:[%s242 + $0x10a] sm:$0xff] %vm180, %v170
      %266 = vst.msk [vmem:[%s242 + $0x112] sm:$0xff] %vm180, %v171
      %267 = vst.msk [vmem:[%s242 + $0x122] sm:$0xff] %vm180, %v172
      %268 = vst.msk [vmem:[%s242 + $0x12a] sm:$0xff] %vm180, %v173
      %269 = vst.msk [vmem:[%s242 + $0x13a] sm:$0xff] %vm180, %v174
      %270 = vst.msk [vmem:[%s242 + $0x142] sm:$0xff] %vm180, %v175
      %271 = vst.msk [vmem:[%s242 + $0x152] sm:$0xff] %vm180, %v176
      %272 = vst.msk [vmem:[%s242 + $0x15a] sm:$0xff] %vm180, %v177
      %273 = vst.msk [vmem:[%s242 + $0x16a] sm:$0xff] %vm180, %v178
      %274 = vst.msk [vmem:[%s242 + $0x172] sm:$0xff] %vm180, %v179
      %v275 = vld [vmem:[#allocation2] sm:$0xff]
      %v276 = vld [vmem:[#allocation2 + $0x8] sm:$0xff]
      %v277 = vld [vmem:[#allocation2 + $0x10] sm:$0xf]
      %v278 = vld [vmem:[#allocation2 + $0x18] sm:$0xff]
      %v279 = vld [vmem:[#allocation2 + $0x20] sm:$0xff]
      %v280 = vld [vmem:[#allocation2 + $0x28] sm:$0xf]
      %v281 = vld [vmem:[#allocation2 + $0x30] sm:$0xff]
      %v282 = vld [vmem:[#allocation2 + $0x38] sm:$0xff]
      %v283 = vld [vmem:[#allocation2 + $0x40] sm:$0xf]
      %v284 = vld [vmem:[#allocation2 + $0x48] sm:$0xff]
      %v285 = vld [vmem:[#allocation2 + $0x50] sm:$0xff]
      %v286 = vld [vmem:[#allocation2 + $0x58] sm:$0xf]
      %v287 = vld [vmem:[#allocation2 + $0x60] sm:$0xff]
      %v288 = vld [vmem:[#allocation2 + $0x68] sm:$0xff]
      %v289 = vld [vmem:[#allocation2 + $0x70] sm:$0xf]
      %v290 = vld [vmem:[#allocation2 + $0x78] sm:$0xff]
      %v291 = vld [vmem:[#allocation2 + $0x80] sm:$0xff]
      %v292 = vld [vmem:[#allocation2 + $0x88] sm:$0xf]
      %v293 = vld [vmem:[#allocation2 + $0x90] sm:$0xff]
      %v294 = vld [vmem:[#allocation2 + $0x98] sm:$0xff]
      %v295 = vld [vmem:[#allocation2 + $0xa0] sm:$0xf]
      %v296 = vld [vmem:[#allocation2 + $0xa8] sm:$0xff]
      %v297 = vld [vmem:[#allocation2 + $0xb0] sm:$0xff]
      %v298 = vld [vmem:[#allocation2 + $0xb8] sm:$0xf]
      %v299 = vld [vmem:[#allocation2 + $0xc0] sm:$0xff]
      %v300 = vld [vmem:[#allocation2 + $0xc8] sm:$0xff]
      %v301 = vld [vmem:[#allocation2 + $0xd0] sm:$0xf]
      %v302 = vld [vmem:[#allocation2 + $0xd8] sm:$0xff]
      %v303 = vld [vmem:[#allocation2 + $0xe0] sm:$0xff]
      %v304 = vld [vmem:[#allocation2 + $0xe8] sm:$0xf]
      %v305 = vld [vmem:[#allocation2 + $0xf0] sm:$0xff]
      %v306 = vld [vmem:[#allocation2 + $0xf8] sm:$0xff]
      %v307 = vld [vmem:[#allocation2 + $0x100] sm:$0xf]
      %v308 = vld [vmem:[#allocation2 + $0x108] sm:$0xff]
      %v309 = vld [vmem:[#allocation2 + $0x110] sm:$0xff]
      %v310 = vld [vmem:[#allocation2 + $0x118] sm:$0xf]
      %v311 = vld [vmem:[#allocation2 + $0x120] sm:$0xff]
      %v312 = vld [vmem:[#allocation2 + $0x128] sm:$0xff]
      %v313 = vld [vmem:[#allocation2 + $0x130] sm:$0xf]
      %v314 = vld [vmem:[#allocation2 + $0x138] sm:$0xff]
      %v315 = vld [vmem:[#allocation2 + $0x140] sm:$0xff]
      %v316 = vld [vmem:[#allocation2 + $0x148] sm:$0xf]
      %v317 = vld [vmem:[#allocation2 + $0x150] sm:$0xff]
      %v318 = vld [vmem:[#allocation2 + $0x158] sm:$0xff]
      %v319 = vld [vmem:[#allocation2 + $0x160] sm:$0xf]
      %v320 = vld [vmem:[#allocation2 + $0x168] sm:$0xff]
      %v321 = vld [vmem:[#allocation2 + $0x170] sm:$0xff]
      %v322 = vld [vmem:[#allocation2 + $0x178] sm:$0xf]
      %v323 = vld [vmem:[#allocation2 + $0x180] sm:$0xff]
      %v324 = vld [vmem:[#allocation2 + $0x188] sm:$0xff]
      %v325 = vld [vmem:[#allocation2 + $0x190] sm:$0xf]
      %v326 = vld [vmem:[#allocation2 + $0x198] sm:$0xff]
      %v327 = vld [vmem:[#allocation2 + $0x1a0] sm:$0xff]
      %v328 = vld [vmem:[#allocation2 + $0x1a8] sm:$0xf]
      %v329 = vld [vmem:[#allocation2 + $0x1b0] sm:$0xff]
      %v330 = vld [vmem:[#allocation2 + $0x1b8] sm:$0xff]
      %v331 = vld [vmem:[#allocation2 + $0x1c0] sm:$0xf]
      %v332 = vld [vmem:[#allocation2 + $0x1c8] sm:$0xff]
      %v333 = vld [vmem:[#allocation2 + $0x1d0] sm:$0xff]
      %v334 = vld [vmem:[#allocation2 + $0x1d8] sm:$0xf]
      %v335 = vmax.f32 %v275, %v278
      %v336 = vmax.f32 %v276, %v279
      %v337 = vmax.f32 %v277, %v280
      %v338 = vmax.f32 %v278, %v281
      %v339 = vmax.f32 %v279, %v282
      %v340 = vmax.f32 %v280, %v283
      %v341 = vmax.f32 %v281, %v284
      %v342 = vmax.f32 %v282, %v285
      %v343 = vmax.f32 %v283, %v286
      %v344 = vmax.f32 %v284, %v287
      %v345 = vmax.f32 %v285, %v288
      %v346 = vmax.f32 %v286, %v289
      %v347 = vmax.f32 %v287, %v290
      %v348 = vmax.f32 %v288, %v291
      %v349 = vmax.f32 %v289, %v292
      %v350 = vmax.f32 %v290, %v293
      %v351 = vmax.f32 %v291, %v294
      %v352 = vmax.f32 %v292, %v295
      %v353 = vmax.f32 %v293, %v296
      %v354 = vmax.f32 %v294, %v297
      %v355 = vmax.f32 %v295, %v298
      %v356 = vmax.f32 %v296, %v299
      %v357 = vmax.f32 %v297, %v300
      %v358 = vmax.f32 %v298, %v301
      %v359 = vmax.f32 %v299, %v302
      %v360 = vmax.f32 %v300, %v303
      %v361 = vmax.f32 %v301, %v304
      %v362 = vmax.f32 %v302, %v305
      %v363 = vmax.f32 %v303, %v306
      %v364 = vmax.f32 %v304, %v307
      %v365 = vmax.f32 %v305, %v308
      %v366 = vmax.f32 %v306, %v309
      %v367 = vmax.f32 %v307, %v310
      %v368 = vmax.f32 %v308, %v311
      %v369 = vmax.f32 %v309, %v312
      %v370 = vmax.f32 %v310, %v313
      %v371 = vmax.f32 %v311, %v314
      %v372 = vmax.f32 %v312, %v315
      %v373 = vmax.f32 %v313, %v316
      %v374 = vmax.f32 %v314, %v317
      %v375 = vmax.f32 %v315, %v318
      %v376 = vmax.f32 %v316, %v319
      %v377 = vmax.f32 %v317, %v320
      %v378 = vmax.f32 %v318, %v321
      %v379 = vmax.f32 %v319, %v322
      %v380 = vmax.f32 %v320, %v323
      %v381 = vmax.f32 %v321, %v324
      %v382 = vmax.f32 %v322, %v325
      %v383 = vmax.f32 %v323, %v326
      %v384 = vmax.f32 %v324, %v327
      %v385 = vmax.f32 %v325, %v328
      %v386 = vmax.f32 %v326, %v329
      %v387 = vmax.f32 %v327, %v330
      %v388 = vmax.f32 %v328, %v331
      %v389 = vmax.f32 %v335, %v341
      %v390 = vmax.f32 %v336, %v342
      %v391 = vmax.f32 %v337, %v343
      %v392 = vmax.f32 %v338, %v344
      %v393 = vmax.f32 %v339, %v345
      %v394 = vmax.f32 %v340, %v346
      %v395 = vmax.f32 %v341, %v347
      %v396 = vmax.f32 %v342, %v348
      %v397 = vmax.f32 %v343, %v349
      %v398 = vmax.f32 %v344, %v350
      %v399 = vmax.f32 %v345, %v351
      %v400 = vmax.f32 %v346, %v352
      %v401 = vmax.f32 %v347, %v353
      %v402 = vmax.f32 %v348, %v354
      %v403 = vmax.f32 %v349, %v355
      %v404 = vmax.f32 %v350, %v356
      %v405 = vmax.f32 %v351, %v357
      %v406 = vmax.f32 %v352, %v358
      %v407 = vmax.f32 %v353, %v359
      %v408 = vmax.f32 %v354, %v360
      %v409 = vmax.f32 %v355, %v361
      %v410 = vmax.f32 %v356, %v362
      %v411 = vmax.f32 %v357, %v363
      %v412 = vmax.f32 %v358, %v364
      %v413 = vmax.f32 %v359, %v365
      %v414 = vmax.f32 %v360, %v366
      %v415 = vmax.f32 %v361, %v367
      %v416 = vmax.f32 %v362, %v368
      %v417 = vmax.f32 %v363, %v369
      %v418 = vmax.f32 %v364, %v370
      %v419 = vmax.f32 %v365, %v371
      %v420 = vmax.f32 %v366, %v372
      %v421 = vmax.f32 %v367, %v373
      %v422 = vmax.f32 %v368, %v374
      %v423 = vmax.f32 %v369, %v375
      %v424 = vmax.f32 %v370, %v376
      %v425 = vmax.f32 %v371, %v377
      %v426 = vmax.f32 %v372, %v378
      %v427 = vmax.f32 %v373, %v379
      %v428 = vmax.f32 %v374, %v380
      %v429 = vmax.f32 %v375, %v381
      %v430 = vmax.f32 %v376, %v382
      %v431 = vmax.f32 %v377, %v383
      %v432 = vmax.f32 %v378, %v384
      %v433 = vmax.f32 %v379, %v385
      %v434 = vmax.f32 %v380, %v386
      %v435 = vmax.f32 %v381, %v387
      %v436 = vmax.f32 %v382, %v388
      %v437 = vmax.f32 %v389, %v287
      %v438 = vmax.f32 %v390, %v288
      %v439 = vmax.f32 %v391, %v289
      %v440 = vmax.f32 %v392, %v290
      %v441 = vmax.f32 %v393, %v291
      %v442 = vmax.f32 %v394, %v292
      %v443 = vmax.f32 %v395, %v293
      %v444 = vmax.f32 %v396, %v294
      %v445 = vmax.f32 %v397, %v295
      %v446 = vmax.f32 %v398, %v296
      %v447 = vmax.f32 %v399, %v297
      %v448 = vmax.f32 %v400, %v298
      %v449 = vmax.f32 %v401, %v299
      %v450 = vmax.f32 %v402, %v300
      %v451 = vmax.f32 %v403, %v301
      %v452 = vmax.f32 %v404, %v302
      %v453 = vmax.f32 %v405, %v303
      %v454 = vmax.f32 %v406, %v304
      %v455 = vmax.f32 %v407, %v305
      %v456 = vmax.f32 %v408, %v306
      %v457 = vmax.f32 %v409, %v307
      %v458 = vmax.f32 %v410, %v308
      %v459 = vmax.f32 %v411, %v309
      %v460 = vmax.f32 %v412, %v310
      %v461 = vmax.f32 %v413, %v311
      %v462 = vmax.f32 %v414, %v312
      %v463 = vmax.f32 %v415, %v313
      %v464 = vmax.f32 %v416, %v314
      %v465 = vmax.f32 %v417, %v315
      %v466 = vmax.f32 %v418, %v316
      %v467 = vmax.f32 %v419, %v317
      %v468 = vmax.f32 %v420, %v318
      %v469 = vmax.f32 %v421, %v319
      %v470 = vmax.f32 %v422, %v320
      %v471 = vmax.f32 %v423, %v321
      %v472 = vmax.f32 %v424, %v322
      %v473 = vmax.f32 %v425, %v323
      %v474 = vmax.f32 %v426, %v324
      %v475 = vmax.f32 %v427, %v325
      %v476 = vmax.f32 %v428, %v326
      %v477 = vmax.f32 %v429, %v327
      %v478 = vmax.f32 %v430, %v328
      %v479 = vmax.f32 %v431, %v329
      %v480 = vmax.f32 %v432, %v330
      %v481 = vmax.f32 %v433, %v331
      %v482 = vmax.f32 %v434, %v332
      %v483 = vmax.f32 %v435, %v333
      %v484 = vmax.f32 %v436, %v334
      %vm533 = vcmask 1046528
      %v534 = vrot.slane %v437, 1
      %v535 = vrot.slane %v438, 1
      %v536 = vsel %vm533, %v534, %v535
      %v537 = vrot.slane %v439, 1
      %v538 = vsel %vm533, %v535, %v537
      %v539 = vrot.slane %v440, 1
      %v540 = vrot.slane %v441, 1
      %v541 = vsel %vm533, %v539, %v540
      %v542 = vrot.slane %v442, 1
      %v543 = vsel %vm533, %v540, %v542
      %v544 = vrot.slane %v443, 1
      %v545 = vrot.slane %v444, 1
      %v546 = vsel %vm533, %v544, %v545
      %v547 = vrot.slane %v445, 1
      %v548 = vsel %vm533, %v545, %v547
      %v549 = vrot.slane %v446, 1
      %v550 = vrot.slane %v447, 1
      %v551 = vsel %vm533, %v549, %v550
      %v552 = vrot.slane %v448, 1
      %v553 = vsel %vm533, %v550, %v552
      %v554 = vrot.slane %v449, 1
      %v555 = vrot.slane %v450, 1
      %v556 = vsel %vm533, %v554, %v555
      %v557 = vrot.slane %v451, 1
      %v558 = vsel %vm533, %v555, %v557
      %v559 = vrot.slane %v452, 1
      %v560 = vrot.slane %v453, 1
      %v561 = vsel %vm533, %v559, %v560
      %v562 = vrot.slane %v454, 1
      %v563 = vsel %vm533, %v560, %v562
      %v564 = vrot.slane %v455, 1
      %v565 = vrot.slane %v456, 1
      %v566 = vsel %vm533, %v564, %v565
      %v567 = vrot.slane %v457, 1
      %v568 = vsel %vm533, %v565, %v567
      %v569 = vrot.slane %v458, 1
      %v570 = vrot.slane %v459, 1
      %v571 = vsel %vm533, %v569, %v570
      %v572 = vrot.slane %v460, 1
      %v573 = vsel %vm533, %v570, %v572
      %v574 = vrot.slane %v461, 1
      %v575 = vrot.slane %v462, 1
      %v576 = vsel %vm533, %v574, %v575
      %v577 = vrot.slane %v463, 1
      %v578 = vsel %vm533, %v575, %v577
      %v579 = vrot.slane %v464, 1
      %v580 = vrot.slane %v465, 1
      %v581 = vsel %vm533, %v579, %v580
      %v582 = vrot.slane %v466, 1
      %v583 = vsel %vm533, %v580, %v582
      %v584 = vrot.slane %v467, 1
      %v585 = vrot.slane %v468, 1
      %v586 = vsel %vm533, %v584, %v585
      %v587 = vrot.slane %v469, 1
      %v588 = vsel %vm533, %v585, %v587
      %v589 = vrot.slane %v470, 1
      %v590 = vrot.slane %v471, 1
      %v591 = vsel %vm533, %v589, %v590
      %v592 = vrot.slane %v472, 1
      %v593 = vsel %vm533, %v590, %v592
      %v594 = vrot.slane %v473, 1
      %v595 = vrot.slane %v474, 1
      %v596 = vsel %vm533, %v594, %v595
      %v597 = vrot.slane %v475, 1
      %v598 = vsel %vm533, %v595, %v597
      %v599 = vrot.slane %v476, 1
      %v600 = vrot.slane %v477, 1
      %v601 = vsel %vm533, %v599, %v600
      %v602 = vrot.slane %v478, 1
      %v603 = vsel %vm533, %v600, %v602
      %v604 = vrot.slane %v479, 1
      %v605 = vrot.slane %v480, 1
      %v606 = vsel %vm533, %v604, %v605
      %v607 = vrot.slane %v481, 1
      %v608 = vsel %vm533, %v605, %v607
      %v609 = vrot.slane %v482, 1
      %v610 = vrot.slane %v483, 1
      %v611 = vsel %vm533, %v609, %v610
      %v612 = vrot.slane %v484, 1
      %v613 = vsel %vm533, %v610, %v612
      %v662 = vmax.f32 %v437, %v536
      %v663 = vmax.f32 %v438, %v538
      %v664 = vmax.f32 %v439, %v537
      %v665 = vmax.f32 %v440, %v541
      %v666 = vmax.f32 %v441, %v543
      %v667 = vmax.f32 %v442, %v542
      %v668 = vmax.f32 %v443, %v546
      %v669 = vmax.f32 %v444, %v548
      %v670 = vmax.f32 %v445, %v547
      %v671 = vmax.f32 %v446, %v551
      %v672 = vmax.f32 %v447, %v553
      %v673 = vmax.f32 %v448, %v552
      %v674 = vmax.f32 %v449, %v556
      %v675 = vmax.f32 %v450, %v558
      %v676 = vmax.f32 %v451, %v557
      %v677 = vmax.f32 %v452, %v561
      %v678 = vmax.f32 %v453, %v563
      %v679 = vmax.f32 %v454, %v562
      %v680 = vmax.f32 %v455, %v566
      %v681 = vmax.f32 %v456, %v568
      %v682 = vmax.f32 %v457, %v567
      %v683 = vmax.f32 %v458, %v571
      %v684 = vmax.f32 %v459, %v573
      %v685 = vmax.f32 %v460, %v572
      %v686 = vmax.f32 %v461, %v576
      %v687 = vmax.f32 %v462, %v578
      %v688 = vmax.f32 %v463, %v577
      %v689 = vmax.f32 %v464, %v581
      %v690 = vmax.f32 %v465, %v583
      %v691 = vmax.f32 %v466, %v582
      %v692 = vmax.f32 %v467, %v586
      %v693 = vmax.f32 %v468, %v588
      %v694 = vmax.f32 %v469, %v587
      %v695 = vmax.f32 %v470, %v591
      %v696 = vmax.f32 %v471, %v593
      %v697 = vmax.f32 %v472, %v592
      %v698 = vmax.f32 %v473, %v596
      %v699 = vmax.f32 %v474, %v598
      %v700 = vmax.f32 %v475, %v597
      %v701 = vmax.f32 %v476, %v601
      %v702 = vmax.f32 %v477, %v603
      %v703 = vmax.f32 %v478, %v602
      %v704 = vmax.f32 %v479, %v606
      %v705 = vmax.f32 %v480, %v608
      %v706 = vmax.f32 %v481, %v607
      %v707 = vmax.f32 %v482, %v611
      %v708 = vmax.f32 %v483, %v613
      %v709 = vmax.f32 %v484, %v612
      %vm758 = vcmask 1045504
      %v759 = vrot.slane %v662, 2
      %v760 = vrot.slane %v663, 2
      %v761 = vsel %vm758, %v759, %v760
      %v762 = vrot.slane %v664, 2
      %v763 = vsel %vm758, %v760, %v762
      %v764 = vrot.slane %v665, 2
      %v765 = vrot.slane %v666, 2
      %v766 = vsel %vm758, %v764, %v765
      %v767 = vrot.slane %v667, 2
      %v768 = vsel %vm758, %v765, %v767
      %v769 = vrot.slane %v668, 2
      %v770 = vrot.slane %v669, 2
      %v771 = vsel %vm758, %v769, %v770
      %v772 = vrot.slane %v670, 2
      %v773 = vsel %vm758, %v770, %v772
      %v774 = vrot.slane %v671, 2
      %v775 = vrot.slane %v672, 2
      %v776 = vsel %vm758, %v774, %v775
      %v777 = vrot.slane %v673, 2
      %v778 = vsel %vm758, %v775, %v777
      %v779 = vrot.slane %v674, 2
      %v780 = vrot.slane %v675, 2
      %v781 = vsel %vm758, %v779, %v780
      %v782 = vrot.slane %v676, 2
      %v783 = vsel %vm758, %v780, %v782
      %v784 = vrot.slane %v677, 2
      %v785 = vrot.slane %v678, 2
      %v786 = vsel %vm758, %v784, %v785
      %v787 = vrot.slane %v679, 2
      %v788 = vsel %vm758, %v785, %v787
      %v789 = vrot.slane %v680, 2
      %v790 = vrot.slane %v681, 2
      %v791 = vsel %vm758, %v789, %v790
      %v792 = vrot.slane %v682, 2
      %v793 = vsel %vm758, %v790, %v792
      %v794 = vrot.slane %v683, 2
      %v795 = vrot.slane %v684, 2
      %v796 = vsel %vm758, %v794, %v795
      %v797 = vrot.slane %v685, 2
      %v798 = vsel %vm758, %v795, %v797
      %v799 = vrot.slane %v686, 2
      %v800 = vrot.slane %v687, 2
      %v801 = vsel %vm758, %v799, %v800
      %v802 = vrot.slane %v688, 2
      %v803 = vsel %vm758, %v800, %v802
      %v804 = vrot.slane %v689, 2
      %v805 = vrot.slane %v690, 2
      %v806 = vsel %vm758, %v804, %v805
      %v807 = vrot.slane %v691, 2
      %v808 = vsel %vm758, %v805, %v807
      %v809 = vrot.slane %v692, 2
      %v810 = vrot.slane %v693, 2
      %v811 = vsel %vm758, %v809, %v810
      %v812 = vrot.slane %v694, 2
      %v813 = vsel %vm758, %v810, %v812
      %v814 = vrot.slane %v695, 2
      %v815 = vrot.slane %v696, 2
      %v816 = vsel %vm758, %v814, %v815
      %v817 = vrot.slane %v697, 2
      %v818 = vsel %vm758, %v815, %v817
      %v819 = vrot.slane %v698, 2
      %v820 = vrot.slane %v699, 2
      %v821 = vsel %vm758, %v819, %v820
      %v822 = vrot.slane %v700, 2
      %v823 = vsel %vm758, %v820, %v822
      %v824 = vrot.slane %v701, 2
      %v825 = vrot.slane %v702, 2
      %v826 = vsel %vm758, %v824, %v825
      %v827 = vrot.slane %v703, 2
      %v828 = vsel %vm758, %v825, %v827
      %v829 = vrot.slane %v704, 2
      %v830 = vrot.slane %v705, 2
      %v831 = vsel %vm758, %v829, %v830
      %v832 = vrot.slane %v706, 2
      %v833 = vsel %vm758, %v830, %v832
      %v834 = vrot.slane %v707, 2
      %v835 = vrot.slane %v708, 2
      %v836 = vsel %vm758, %v834, %v835
      %v837 = vrot.slane %v709, 2
      %v838 = vsel %vm758, %v835, %v837
      %v871 = vmax.f32 %v662, %v761
      %v872 = vmax.f32 %v663, %v763
      %v873 = vmax.f32 %v665, %v766
      %v874 = vmax.f32 %v666, %v768
      %v875 = vmax.f32 %v668, %v771
      %v876 = vmax.f32 %v669, %v773
      %v877 = vmax.f32 %v671, %v776
      %v878 = vmax.f32 %v672, %v778
      %v879 = vmax.f32 %v674, %v781
      %v880 = vmax.f32 %v675, %v783
      %v881 = vmax.f32 %v677, %v786
      %v882 = vmax.f32 %v678, %v788
      %v883 = vmax.f32 %v680, %v791
      %v884 = vmax.f32 %v681, %v793
      %v885 = vmax.f32 %v683, %v796
      %v886 = vmax.f32 %v684, %v798
      %v887 = vmax.f32 %v686, %v801
      %v888 = vmax.f32 %v687, %v803
      %v889 = vmax.f32 %v689, %v806
      %v890 = vmax.f32 %v690, %v808
      %v891 = vmax.f32 %v692, %v811
      %v892 = vmax.f32 %v693, %v813
      %v893 = vmax.f32 %v695, %v816
      %v894 = vmax.f32 %v696, %v818
      %v895 = vmax.f32 %v698, %v821
      %v896 = vmax.f32 %v699, %v823
      %v897 = vmax.f32 %v701, %v826
      %v898 = vmax.f32 %v702, %v828
      %v899 = vmax.f32 %v704, %v831
      %v900 = vmax.f32 %v705, %v833
      %v901 = vmax.f32 %v707, %v836
      %v902 = vmax.f32 %v708, %v838
      %vm903 = vcmask 1043456
      %v904 = vrot.slane %v437, 4
      %v905 = vrot.slane %v438, 4
      %v906 = vsel %vm903, %v904, %v905
      %v907 = vrot.slane %v439, 4
      %v908 = vsel %vm903, %v905, %v907
      %v909 = vrot.slane %v440, 4
      %v910 = vrot.slane %v441, 4
      %v911 = vsel %vm903, %v909, %v910
      %v912 = vrot.slane %v442, 4
      %v913 = vsel %vm903, %v910, %v912
      %v914 = vrot.slane %v443, 4
      %v915 = vrot.slane %v444, 4
      %v916 = vsel %vm903, %v914, %v915
      %v917 = vrot.slane %v445, 4
      %v918 = vsel %vm903, %v915, %v917
      %v919 = vrot.slane %v446, 4
      %v920 = vrot.slane %v447, 4
      %v921 = vsel %vm903, %v919, %v920
      %v922 = vrot.slane %v448, 4
      %v923 = vsel %vm903, %v920, %v922
      %v924 = vrot.slane %v449, 4
      %v925 = vrot.slane %v450, 4
      %v926 = vsel %vm903, %v924, %v925
      %v927 = vrot.slane %v451, 4
      %v928 = vsel %vm903, %v925, %v927
      %v929 = vrot.slane %v452, 4
      %v930 = vrot.slane %v453, 4
      %v931 = vsel %vm903, %v929, %v930
      %v932 = vrot.slane %v454, 4
      %v933 = vsel %vm903, %v930, %v932
      %v934 = vrot.slane %v455, 4
      %v935 = vrot.slane %v456, 4
      %v936 = vsel %vm903, %v934, %v935
      %v937 = vrot.slane %v457, 4
      %v938 = vsel %vm903, %v935, %v937
      %v939 = vrot.slane %v458, 4
      %v940 = vrot.slane %v459, 4
      %v941 = vsel %vm903, %v939, %v940
      %v942 = vrot.slane %v460, 4
      %v943 = vsel %vm903, %v940, %v942
      %v944 = vrot.slane %v461, 4
      %v945 = vrot.slane %v462, 4
      %v946 = vsel %vm903, %v944, %v945
      %v947 = vrot.slane %v463, 4
      %v948 = vsel %vm903, %v945, %v947
      %v949 = vrot.slane %v464, 4
      %v950 = vrot.slane %v465, 4
      %v951 = vsel %vm903, %v949, %v950
      %v952 = vrot.slane %v466, 4
      %v953 = vsel %vm903, %v950, %v952
      %v954 = vrot.slane %v467, 4
      %v955 = vrot.slane %v468, 4
      %v956 = vsel %vm903, %v954, %v955
      %v957 = vrot.slane %v469, 4
      %v958 = vsel %vm903, %v955, %v957
      %v959 = vrot.slane %v470, 4
      %v960 = vrot.slane %v471, 4
      %v961 = vsel %vm903, %v959, %v960
      %v962 = vrot.slane %v472, 4
      %v963 = vsel %vm903, %v960, %v962
      %v964 = vrot.slane %v473, 4
      %v965 = vrot.slane %v474, 4
      %v966 = vsel %vm903, %v964, %v965
      %v967 = vrot.slane %v475, 4
      %v968 = vsel %vm903, %v965, %v967
      %v969 = vrot.slane %v476, 4
      %v970 = vrot.slane %v477, 4
      %v971 = vsel %vm903, %v969, %v970
      %v972 = vrot.slane %v478, 4
      %v973 = vsel %vm903, %v970, %v972
      %v974 = vrot.slane %v479, 4
      %v975 = vrot.slane %v480, 4
      %v976 = vsel %vm903, %v974, %v975
      %v977 = vrot.slane %v481, 4
      %v978 = vsel %vm903, %v975, %v977
      %v979 = vrot.slane %v482, 4
      %v980 = vrot.slane %v483, 4
      %v981 = vsel %vm903, %v979, %v980
      %v982 = vrot.slane %v484, 4
      %v983 = vsel %vm903, %v980, %v982
      %v1016 = vmax.f32 %v871, %v906
      %v1017 = vmax.f32 %v872, %v908
      %v1018 = vmax.f32 %v873, %v911
      %v1019 = vmax.f32 %v874, %v913
      %v1020 = vmax.f32 %v875, %v916
      %v1021 = vmax.f32 %v876, %v918
      %v1022 = vmax.f32 %v877, %v921
      %v1023 = vmax.f32 %v878, %v923
      %v1024 = vmax.f32 %v879, %v926
      %v1025 = vmax.f32 %v880, %v928
      %v1026 = vmax.f32 %v881, %v931
      %v1027 = vmax.f32 %v882, %v933
      %v1028 = vmax.f32 %v883, %v936
      %v1029 = vmax.f32 %v884, %v938
      %v1030 = vmax.f32 %v885, %v941
      %v1031 = vmax.f32 %v886, %v943
      %v1032 = vmax.f32 %v887, %v946
      %v1033 = vmax.f32 %v888, %v948
      %v1034 = vmax.f32 %v889, %v951
      %v1035 = vmax.f32 %v890, %v953
      %v1036 = vmax.f32 %v891, %v956
      %v1037 = vmax.f32 %v892, %v958
      %v1038 = vmax.f32 %v893, %v961
      %v1039 = vmax.f32 %v894, %v963
      %v1040 = vmax.f32 %v895, %v966
      %v1041 = vmax.f32 %v896, %v968
      %v1042 = vmax.f32 %v897, %v971
      %v1043 = vmax.f32 %v898, %v973
      %v1044 = vmax.f32 %v899, %v976
      %v1045 = vmax.f32 %v900, %v978
      %v1046 = vmax.f32 %v901, %v981
      %v1047 = vmax.f32 %v902, %v983
      %1048 = vst.msk [vmem:[%s242 + $0x2] sm:$0xff] %vm180, %v1016
      %1049 = vst.msk [vmem:[%s242 + $0xa] sm:$0xff] %vm180, %v1017
      %1050 = vst.msk [vmem:[%s242 + $0x1a] sm:$0xff] %vm180, %v1018
      %1051 = vst.msk [vmem:[%s242 + $0x22] sm:$0xff] %vm180, %v1019
      %1052 = vst.msk [vmem:[%s242 + $0x32] sm:$0xff] %vm180, %v1020
      %1053 = vst.msk [vmem:[%s242 + $0x3a] sm:$0xff] %vm180, %v1021
      %1054 = vst.msk [vmem:[%s242 + $0x4a] sm:$0xff] %vm180, %v1022
      %1055 = vst.msk [vmem:[%s242 + $0x52] sm:$0xff] %vm180, %v1023
      %1056 = vst.msk [vmem:[%s242 + $0x62] sm:$0xff] %vm180, %v1024
      %1057 = vst.msk [vmem:[%s242 + $0x6a] sm:$0xff] %vm180, %v1025
      %1058 = vst.msk [vmem:[%s242 + $0x7a] sm:$0xff] %vm180, %v1026
      %1059 = vst.msk [vmem:[%s242 + $0x82] sm:$0xff] %vm180, %v1027
      %1060 = vst.msk [vmem:[%s242 + $0x92] sm:$0xff] %vm180, %v1028
      %1061 = vst.msk [vmem:[%s242 + $0x9a] sm:$0xff] %vm180, %v1029
      %1062 = vst.msk [vmem:[%s242 + $0xaa] sm:$0xff] %vm180, %v1030
      %1063 = vst.msk [vmem:[%s242 + $0xb2] sm:$0xff] %vm180, %v1031
      %1064 = vst.msk [vmem:[%s242 + $0xc2] sm:$0xff] %vm180, %v1032
      %1065 = vst.msk [vmem:[%s242 + $0xca] sm:$0xff] %vm180, %v1033
      %1066 = vst.msk [vmem:[%s242 + $0xda] sm:$0xff] %vm180, %v1034
      %1067 = vst.msk [vmem:[%s242 + $0xe2] sm:$0xff] %vm180, %v1035
      %1068 = vst.msk [vmem:[%s242 + $0xf2] sm:$0xff] %vm180, %v1036
      %1069 = vst.msk [vmem:[%s242 + $0xfa] sm:$0xff] %vm180, %v1037
      %1070 = vst.msk [vmem:[%s242 + $0x10a] sm:$0xff] %vm180, %v1038
      %1071 = vst.msk [vmem:[%s242 + $0x112] sm:$0xff] %vm180, %v1039
      %1072 = vst.msk [vmem:[%s242 + $0x122] sm:$0xff] %vm180, %v1040
      %1073 = vst.msk [vmem:[%s242 + $0x12a] sm:$0xff] %vm180, %v1041
      %1074 = vst.msk [vmem:[%s242 + $0x13a] sm:$0xff] %vm180, %v1042
      %1075 = vst.msk [vmem:[%s242 + $0x142] sm:$0xff] %vm180, %v1043
      %1076 = vst.msk [vmem:[%s242 + $0x152] sm:$0xff] %vm180, %v1044
      %1077 = vst.msk [vmem:[%s242 + $0x15a] sm:$0xff] %vm180, %v1045
      %1078 = vst.msk [vmem:[%s242 + $0x16a] sm:$0xff] %vm180, %v1046
      %1079 = vst.msk [vmem:[%s242 + $0x172] sm:$0xff] %vm180, %v1047
      %v1080 = vld [vmem:[#allocation2] sm:$0xff]
      %v1081 = vld [vmem:[#allocation2 + $0x8] sm:$0xff]
      %v1082 = vld [vmem:[#allocation2 + $0x10] sm:$0xf]
      %v1083 = vld [vmem:[#allocation2 + $0x18] sm:$0xff]
      %v1084 = vld [vmem:[#allocation2 + $0x20] sm:$0xff]
      %v1085 = vld [vmem:[#allocation2 + $0x28] sm:$0xf]
      %v1086 = vld [vmem:[#allocation2 + $0x30] sm:$0xff]
      %v1087 = vld [vmem:[#allocation2 + $0x38] sm:$0xff]
      %v1088 = vld [vmem:[#allocation2 + $0x40] sm:$0xf]
      %v1089 = vld [vmem:[#allocation2 + $0x48] sm:$0xff]
      %v1090 = vld [vmem:[#allocation2 + $0x50] sm:$0xff]
      %v1091 = vld [vmem:[#allocation2 + $0x58] sm:$0xf]
      %v1092 = vld [vmem:[#allocation2 + $0x60] sm:$0xff]
      %v1093 = vld [vmem:[#allocation2 + $0x68] sm:$0xff]
      %v1094 = vld [vmem:[#allocation2 + $0x70] sm:$0xf]
      %v1095 = vld [vmem:[#allocation2 + $0x78] sm:$0xff]
      %v1096 = vld [vmem:[#allocation2 + $0x80] sm:$0xff]
      %v1097 = vld [vmem:[#allocation2 + $0x88] sm:$0xf]
      %v1098 = vld [vmem:[#allocation2 + $0x90] sm:$0xff]
      %v1099 = vld [vmem:[#allocation2 + $0x98] sm:$0xff]
      %v1100 = vld [vmem:[#allocation2 + $0xa0] sm:$0xf]
      %v1101 = vld [vmem:[#allocation2 + $0xa8] sm:$0xff]
      %v1102 = vld [vmem:[#allocation2 + $0xb0] sm:$0xff]
      %v1103 = vld [vmem:[#allocation2 + $0xb8] sm:$0xf]
      %v1104 = vld [vmem:[#allocation2 + $0xc0] sm:$0xff]
      %v1105 = vld [vmem:[#allocation2 + $0xc8] sm:$0xff]
      %v1106 = vld [vmem:[#allocation2 + $0xd0] sm:$0xf]
      %v1107 = vld [vmem:[#allocation2 + $0xd8] sm:$0xff]
      %v1108 = vld [vmem:[#allocation2 + $0xe0] sm:$0xff]
      %v1109 = vld [vmem:[#allocation2 + $0xe8] sm:$0xf]
      %v1110 = vld [vmem:[#allocation2 + $0xf0] sm:$0xff]
      %v1111 = vld [vmem:[#allocation2 + $0xf8] sm:$0xff]
      %v1112 = vld [vmem:[#allocation2 + $0x100] sm:$0xf]
      %v1113 = vld [vmem:[#allocation2 + $0x108] sm:$0xff]
      %v1114 = vld [vmem:[#allocation2 + $0x110] sm:$0xff]
      %v1115 = vld [vmem:[#allocation2 + $0x118] sm:$0xf]
      %v1116 = vld [vmem:[#allocation2 + $0x120] sm:$0xff]
      %v1117 = vld [vmem:[#allocation2 + $0x128] sm:$0xff]
      %v1118 = vld [vmem:[#allocation2 + $0x130] sm:$0xf]
      %v1119 = vld [vmem:[#allocation2 + $0x138] sm:$0xff]
      %v1120 = vld [vmem:[#allocation2 + $0x140] sm:$0xff]
      %v1121 = vld [vmem:[#allocation2 + $0x148] sm:$0xf]
      %v1122 = vld [vmem:[#allocation2 + $0x150] sm:$0xff]
      %v1123 = vld [vmem:[#allocation2 + $0x158] sm:$0xff]
      %v1124 = vld [vmem:[#allocation2 + $0x160] sm:$0xf]
      %v1125 = vld [vmem:[#allocation2 + $0x168] sm:$0xff]
      %v1126 = vld [vmem:[#allocation2 + $0x170] sm:$0xff]
      %v1127 = vld [vmem:[#allocation2 + $0x178] sm:$0xf]
      %v1128 = vld [vmem:[#allocation2 + $0x180] sm:$0xff]
      %v1129 = vld [vmem:[#allocation2 + $0x188] sm:$0xff]
      %v1130 = vld [vmem:[#allocation2 + $0x190] sm:$0xf]
      %v1131 = vld [vmem:[#allocation2 + $0x198] sm:$0xff]
      %v1132 = vld [vmem:[#allocation2 + $0x1a0] sm:$0xff]
      %v1133 = vld [vmem:[#allocation2 + $0x1a8] sm:$0xf]
      %v1134 = vld [vmem:[#allocation2 + $0x1b0] sm:$0xff]
      %v1135 = vld [vmem:[#allocation2 + $0x1b8] sm:$0xff]
      %v1136 = vld [vmem:[#allocation2 + $0x1c0] sm:$0xf]
      %v1137 = vld [vmem:[#allocation2 + $0x1c8] sm:$0xff]
      %v1138 = vld [vmem:[#allocation2 + $0x1d0] sm:$0xff]
      %v1139 = vld [vmem:[#allocation2 + $0x1d8] sm:$0xf]
      %v1140 = vmax.f32 %v1080, %v1083
      %v1141 = vmax.f32 %v1081, %v1084
      %v1142 = vmax.f32 %v1082, %v1085
      %v1143 = vmax.f32 %v1083, %v1086
      %v1144 = vmax.f32 %v1084, %v1087
      %v1145 = vmax.f32 %v1085, %v1088
      %v1146 = vmax.f32 %v1086, %v1089
      %v1147 = vmax.f32 %v1087, %v1090
      %v1148 = vmax.f32 %v1088, %v1091
      %v1149 = vmax.f32 %v1089, %v1092
      %v1150 = vmax.f32 %v1090, %v1093
      %v1151 = vmax.f32 %v1091, %v1094
      %v1152 = vmax.f32 %v1092, %v1095
      %v1153 = vmax.f32 %v1093, %v1096
      %v1154 = vmax.f32 %v1094, %v1097
      %v1155 = vmax.f32 %v1095, %v1098
      %v1156 = vmax.f32 %v1096, %v1099
      %v1157 = vmax.f32 %v1097, %v1100
      %v1158 = vmax.f32 %v1098, %v1101
      %v1159 = vmax.f32 %v1099, %v1102
      %v1160 = vmax.f32 %v1100, %v1103
      %v1161 = vmax.f32 %v1101, %v1104
      %v1162 = vmax.f32 %v1102, %v1105
      %v1163 = vmax.f32 %v1103, %v1106
      %v1164 = vmax.f32 %v1104, %v1107
      %v1165 = vmax.f32 %v1105, %v1108
      %v1166 = vmax.f32 %v1106, %v1109
      %v1167 = vmax.f32 %v1107, %v1110
      %v1168 = vmax.f32 %v1108, %v1111
      %v1169 = vmax.f32 %v1109, %v1112
      %v1170 = vmax.f32 %v1110, %v1113
      %v1171 = vmax.f32 %v1111, %v1114
      %v1172 = vmax.f32 %v1112, %v1115
      %v1173 = vmax.f32 %v1113, %v1116
      %v1174 = vmax.f32 %v1114, %v1117
      %v1175 = vmax.f32 %v1115, %v1118
      %v1176 = vmax.f32 %v1116, %v1119
      %v1177 = vmax.f32 %v1117, %v1120
      %v1178 = vmax.f32 %v1118, %v1121
      %v1179 = vmax.f32 %v1119, %v1122
      %v1180 = vmax.f32 %v1120, %v1123
      %v1181 = vmax.f32 %v1121, %v1124
      %v1182 = vmax.f32 %v1122, %v1125
      %v1183 = vmax.f32 %v1123, %v1126
      %v1184 = vmax.f32 %v1124, %v1127
      %v1185 = vmax.f32 %v1125, %v1128
      %v1186 = vmax.f32 %v1126, %v1129
      %v1187 = vmax.f32 %v1127, %v1130
      %v1188 = vmax.f32 %v1128, %v1131
      %v1189 = vmax.f32 %v1129, %v1132
      %v1190 = vmax.f32 %v1130, %v1133
      %v1191 = vmax.f32 %v1131, %v1134
      %v1192 = vmax.f32 %v1132, %v1135
      %v1193 = vmax.f32 %v1133, %v1136
      %v1194 = vmax.f32 %v1140, %v1146
      %v1195 = vmax.f32 %v1141, %v1147
      %v1196 = vmax.f32 %v1142, %v1148
      %v1197 = vmax.f32 %v1143, %v1149
      %v1198 = vmax.f32 %v1144, %v1150
      %v1199 = vmax.f32 %v1145, %v1151
      %v1200 = vmax.f32 %v1146, %v1152
      %v1201 = vmax.f32 %v1147, %v1153
      %v1202 = vmax.f32 %v1148, %v1154
      %v1203 = vmax.f32 %v1149, %v1155
      %v1204 = vmax.f32 %v1150, %v1156
      %v1205 = vmax.f32 %v1151, %v1157
      %v1206 = vmax.f32 %v1152, %v1158
      %v1207 = vmax.f32 %v1153, %v1159
      %v1208 = vmax.f32 %v1154, %v1160
      %v1209 = vmax.f32 %v1155, %v1161
      %v1210 = vmax.f32 %v1156, %v1162
      %v1211 = vmax.f32 %v1157, %v1163
      %v1212 = vmax.f32 %v1158, %v1164
      %v1213 = vmax.f32 %v1159, %v1165
      %v1214 = vmax.f32 %v1160, %v1166
      %v1215 = vmax.f32 %v1161, %v1167
      %v1216 = vmax.f32 %v1162, %v1168
      %v1217 = vmax.f32 %v1163, %v1169
      %v1218 = vmax.f32 %v1164, %v1170
      %v1219 = vmax.f32 %v1165, %v1171
      %v1220 = vmax.f32 %v1166, %v1172
      %v1221 = vmax.f32 %v1167, %v1173
      %v1222 = vmax.f32 %v1168, %v1174
      %v1223 = vmax.f32 %v1169, %v1175
      %v1224 = vmax.f32 %v1170, %v1176
      %v1225 = vmax.f32 %v1171, %v1177
      %v1226 = vmax.f32 %v1172, %v1178
      %v1227 = vmax.f32 %v1173, %v1179
      %v1228 = vmax.f32 %v1174, %v1180
      %v1229 = vmax.f32 %v1175, %v1181
      %v1230 = vmax.f32 %v1176, %v1182
      %v1231 = vmax.f32 %v1177, %v1183
      %v1232 = vmax.f32 %v1178, %v1184
      %v1233 = vmax.f32 %v1179, %v1185
      %v1234 = vmax.f32 %v1180, %v1186
      %v1235 = vmax.f32 %v1181, %v1187
      %v1236 = vmax.f32 %v1182, %v1188
      %v1237 = vmax.f32 %v1183, %v1189
      %v1238 = vmax.f32 %v1184, %v1190
      %v1239 = vmax.f32 %v1185, %v1191
      %v1240 = vmax.f32 %v1186, %v1192
      %v1241 = vmax.f32 %v1187, %v1193
      %v1242 = vmax.f32 %v1194, %v1092
      %v1243 = vmax.f32 %v1195, %v1093
      %v1244 = vmax.f32 %v1196, %v1094
      %v1245 = vmax.f32 %v1197, %v1095
      %v1246 = vmax.f32 %v1198, %v1096
      %v1247 = vmax.f32 %v1199, %v1097
      %v1248 = vmax.f32 %v1200, %v1098
      %v1249 = vmax.f32 %v1201, %v1099
      %v1250 = vmax.f32 %v1202, %v1100
      %v1251 = vmax.f32 %v1203, %v1101
      %v1252 = vmax.f32 %v1204, %v1102
      %v1253 = vmax.f32 %v1205, %v1103
      %v1254 = vmax.f32 %v1206, %v1104
      %v1255 = vmax.f32 %v1207, %v1105
      %v1256 = vmax.f32 %v1208, %v1106
      %v1257 = vmax.f32 %v1209, %v1107
      %v1258 = vmax.f32 %v1210, %v1108
      %v1259 = vmax.f32 %v1211, %v1109
      %v1260 = vmax.f32 %v1212, %v1110
      %v1261 = vmax.f32 %v1213, %v1111
      %v1262 = vmax.f32 %v1214, %v1112
      %v1263 = vmax.f32 %v1215, %v1113
      %v1264 = vmax.f32 %v1216, %v1114
      %v1265 = vmax.f32 %v1217, %v1115
      %v1266 = vmax.f32 %v1218, %v1116
      %v1267 = vmax.f32 %v1219, %v1117
      %v1268 = vmax.f32 %v1220, %v1118
      %v1269 = vmax.f32 %v1221, %v1119
      %v1270 = vmax.f32 %v1222, %v1120
      %v1271 = vmax.f32 %v1223, %v1121
      %v1272 = vmax.f32 %v1224, %v1122
      %v1273 = vmax.f32 %v1225, %v1123
      %v1274 = vmax.f32 %v1226, %v1124
      %v1275 = vmax.f32 %v1227, %v1125
      %v1276 = vmax.f32 %v1228, %v1126
      %v1277 = vmax.f32 %v1229, %v1127
      %v1278 = vmax.f32 %v1230, %v1128
      %v1279 = vmax.f32 %v1231, %v1129
      %v1280 = vmax.f32 %v1232, %v1130
      %v1281 = vmax.f32 %v1233, %v1131
      %v1282 = vmax.f32 %v1234, %v1132
      %v1283 = vmax.f32 %v1235, %v1133
      %v1284 = vmax.f32 %v1236, %v1134
      %v1285 = vmax.f32 %v1237, %v1135
      %v1286 = vmax.f32 %v1238, %v1136
      %v1287 = vmax.f32 %v1239, %v1137
      %v1288 = vmax.f32 %v1240, %v1138
      %v1289 = vmax.f32 %v1241, %v1139
      %v1338 = vrot.slane %v1242, 1
      %v1339 = vrot.slane %v1243, 1
      %v1340 = vsel %vm533, %v1338, %v1339
      %v1341 = vrot.slane %v1244, 1
      %v1342 = vsel %vm533, %v1339, %v1341
      %v1343 = vrot.slane %v1245, 1
      %v1344 = vrot.slane %v1246, 1
      %v1345 = vsel %vm533, %v1343, %v1344
      %v1346 = vrot.slane %v1247, 1
      %v1347 = vsel %vm533, %v1344, %v1346
      %v1348 = vrot.slane %v1248, 1
      %v1349 = vrot.slane %v1249, 1
      %v1350 = vsel %vm533, %v1348, %v1349
      %v1351 = vrot.slane %v1250, 1
      %v1352 = vsel %vm533, %v1349, %v1351
      %v1353 = vrot.slane %v1251, 1
      %v1354 = vrot.slane %v1252, 1
      %v1355 = vsel %vm533, %v1353, %v1354
      %v1356 = vrot.slane %v1253, 1
      %v1357 = vsel %vm533, %v1354, %v1356
      %v1358 = vrot.slane %v1254, 1
      %v1359 = vrot.slane %v1255, 1
      %v1360 = vsel %vm533, %v1358, %v1359
      %v1361 = vrot.slane %v1256, 1
      %v1362 = vsel %vm533, %v1359, %v1361
      %v1363 = vrot.slane %v1257, 1
      %v1364 = vrot.slane %v1258, 1
      %v1365 = vsel %vm533, %v1363, %v1364
      %v1366 = vrot.slane %v1259, 1
      %v1367 = vsel %vm533, %v1364, %v1366
      %v1368 = vrot.slane %v1260, 1
      %v1369 = vrot.slane %v1261, 1
      %v1370 = vsel %vm533, %v1368, %v1369
      %v1371 = vrot.slane %v1262, 1
      %v1372 = vsel %vm533, %v1369, %v1371
      %v1373 = vrot.slane %v1263, 1
      %v1374 = vrot.slane %v1264, 1
      %v1375 = vsel %vm533, %v1373, %v1374
      %v1376 = vrot.slane %v1265, 1
      %v1377 = vsel %vm533, %v1374, %v1376
      %v1378 = vrot.slane %v1266, 1
      %v1379 = vrot.slane %v1267, 1
      %v1380 = vsel %vm533, %v1378, %v1379
      %v1381 = vrot.slane %v1268, 1
      %v1382 = vsel %vm533, %v1379, %v1381
      %v1383 = vrot.slane %v1269, 1
      %v1384 = vrot.slane %v1270, 1
      %v1385 = vsel %vm533, %v1383, %v1384
      %v1386 = vrot.slane %v1271, 1
      %v1387 = vsel %vm533, %v1384, %v1386
      %v1388 = vrot.slane %v1272, 1
      %v1389 = vrot.slane %v1273, 1
      %v1390 = vsel %vm533, %v1388, %v1389
      %v1391 = vrot.slane %v1274, 1
      %v1392 = vsel %vm533, %v1389, %v1391
      %v1393 = vrot.slane %v1275, 1
      %v1394 = vrot.slane %v1276, 1
      %v1395 = vsel %vm533, %v1393, %v1394
      %v1396 = vrot.slane %v1277, 1
      %v1397 = vsel %vm533, %v1394, %v1396
      %v1398 = vrot.slane %v1278, 1
      %v1399 = vrot.slane %v1279, 1
      %v1400 = vsel %vm533, %v1398, %v1399
      %v1401 = vrot.slane %v1280, 1
      %v1402 = vsel %vm533, %v1399, %v1401
      %v1403 = vrot.slane %v1281, 1
      %v1404 = vrot.slane %v1282, 1
      %v1405 = vsel %vm533, %v1403, %v1404
      %v1406 = vrot.slane %v1283, 1
      %v1407 = vsel %vm533, %v1404, %v1406
      %v1408 = vrot.slane %v1284, 1
      %v1409 = vrot.slane %v1285, 1
      %v1410 = vsel %vm533, %v1408, %v1409
      %v1411 = vrot.slane %v1286, 1
      %v1412 = vsel %vm533, %v1409, %v1411
      %v1413 = vrot.slane %v1287, 1
      %v1414 = vrot.slane %v1288, 1
      %v1415 = vsel %vm533, %v1413, %v1414
      %v1416 = vrot.slane %v1289, 1
      %v1417 = vsel %vm533, %v1414, %v1416
      %v1466 = vmax.f32 %v1242, %v1340
      %v1467 = vmax.f32 %v1243, %v1342
      %v1468 = vmax.f32 %v1244, %v1341
      %v1469 = vmax.f32 %v1245, %v1345
      %v1470 = vmax.f32 %v1246, %v1347
      %v1471 = vmax.f32 %v1247, %v1346
      %v1472 = vmax.f32 %v1248, %v1350
      %v1473 = vmax.f32 %v1249, %v1352
      %v1474 = vmax.f32 %v1250, %v1351
      %v1475 = vmax.f32 %v1251, %v1355
      %v1476 = vmax.f32 %v1252, %v1357
      %v1477 = vmax.f32 %v1253, %v1356
      %v1478 = vmax.f32 %v1254, %v1360
      %v1479 = vmax.f32 %v1255, %v1362
      %v1480 = vmax.f32 %v1256, %v1361
      %v1481 = vmax.f32 %v1257, %v1365
      %v1482 = vmax.f32 %v1258, %v1367
      %v1483 = vmax.f32 %v1259, %v1366
      %v1484 = vmax.f32 %v1260, %v1370
      %v1485 = vmax.f32 %v1261, %v1372
      %v1486 = vmax.f32 %v1262, %v1371
      %v1487 = vmax.f32 %v1263, %v1375
      %v1488 = vmax.f32 %v1264, %v1377
      %v1489 = vmax.f32 %v1265, %v1376
      %v1490 = vmax.f32 %v1266, %v1380
      %v1491 = vmax.f32 %v1267, %v1382
      %v1492 = vmax.f32 %v1268, %v1381
      %v1493 = vmax.f32 %v1269, %v1385
      %v1494 = vmax.f32 %v1270, %v1387
      %v1495 = vmax.f32 %v1271, %v1386
      %v1496 = vmax.f32 %v1272, %v1390
      %v1497 = vmax.f32 %v1273, %v1392
      %v1498 = vmax.f32 %v1274, %v1391
      %v1499 = vmax.f32 %v1275, %v1395
      %v1500 = vmax.f32 %v1276, %v1397
      %v1501 = vmax.f32 %v1277, %v1396
      %v1502 = vmax.f32 %v1278, %v1400
      %v1503 = vmax.f32 %v1279, %v1402
      %v1504 = vmax.f32 %v1280, %v1401
      %v1505 = vmax.f32 %v1281, %v1405
      %v1506 = vmax.f32 %v1282, %v1407
      %v1507 = vmax.f32 %v1283, %v1406
      %v1508 = vmax.f32 %v1284, %v1410
      %v1509 = vmax.f32 %v1285, %v1412
      %v1510 = vmax.f32 %v1286, %v1411
      %v1511 = vmax.f32 %v1287, %v1415
      %v1512 = vmax.f32 %v1288, %v1417
      %v1513 = vmax.f32 %v1289, %v1416
      %v1562 = vrot.slane %v1466, 2
      %v1563 = vrot.slane %v1467, 2
      %v1564 = vsel %vm758, %v1562, %v1563
      %v1565 = vrot.slane %v1468, 2
      %v1566 = vsel %vm758, %v1563, %v1565
      %v1567 = vrot.slane %v1469, 2
      %v1568 = vrot.slane %v1470, 2
      %v1569 = vsel %vm758, %v1567, %v1568
      %v1570 = vrot.slane %v1471, 2
      %v1571 = vsel %vm758, %v1568, %v1570
      %v1572 = vrot.slane %v1472, 2
      %v1573 = vrot.slane %v1473, 2
      %v1574 = vsel %vm758, %v1572, %v1573
      %v1575 = vrot.slane %v1474, 2
      %v1576 = vsel %vm758, %v1573, %v1575
      %v1577 = vrot.slane %v1475, 2
      %v1578 = vrot.slane %v1476, 2
      %v1579 = vsel %vm758, %v1577, %v1578
      %v1580 = vrot.slane %v1477, 2
      %v1581 = vsel %vm758, %v1578, %v1580
      %v1582 = vrot.slane %v1478, 2
      %v1583 = vrot.slane %v1479, 2
      %v1584 = vsel %vm758, %v1582, %v1583
      %v1585 = vrot.slane %v1480, 2
      %v1586 = vsel %vm758, %v1583, %v1585
      %v1587 = vrot.slane %v1481, 2
      %v1588 = vrot.slane %v1482, 2
      %v1589 = vsel %vm758, %v1587, %v1588
      %v1590 = vrot.slane %v1483, 2
      %v1591 = vsel %vm758, %v1588, %v1590
      %v1592 = vrot.slane %v1484, 2
      %v1593 = vrot.slane %v1485, 2
      %v1594 = vsel %vm758, %v1592, %v1593
      %v1595 = vrot.slane %v1486, 2
      %v1596 = vsel %vm758, %v1593, %v1595
      %v1597 = vrot.slane %v1487, 2
      %v1598 = vrot.slane %v1488, 2
      %v1599 = vsel %vm758, %v1597, %v1598
      %v1600 = vrot.slane %v1489, 2
      %v1601 = vsel %vm758, %v1598, %v1600
      %v1602 = vrot.slane %v1490, 2
      %v1603 = vrot.slane %v1491, 2
      %v1604 = vsel %vm758, %v1602, %v1603
      %v1605 = vrot.slane %v1492, 2
      %v1606 = vsel %vm758, %v1603, %v1605
      %v1607 = vrot.slane %v1493, 2
      %v1608 = vrot.slane %v1494, 2
      %v1609 = vsel %vm758, %v1607, %v1608
      %v1610 = vrot.slane %v1495, 2
      %v1611 = vsel %vm758, %v1608, %v1610
      %v1612 = vrot.slane %v1496, 2
      %v1613 = vrot.slane %v1497, 2
      %v1614 = vsel %vm758, %v1612, %v1613
      %v1615 = vrot.slane %v1498, 2
      %v1616 = vsel %vm758, %v1613, %v1615
      %v1617 = vrot.slane %v1499, 2
      %v1618 = vrot.slane %v1500, 2
      %v1619 = vsel %vm758, %v1617, %v1618
      %v1620 = vrot.slane %v1501, 2
      %v1621 = vsel %vm758, %v1618, %v1620
      %v1622 = vrot.slane %v1502, 2
      %v1623 = vrot.slane %v1503, 2
      %v1624 = vsel %vm758, %v1622, %v1623
      %v1625 = vrot.slane %v1504, 2
      %v1626 = vsel %vm758, %v1623, %v1625
      %v1627 = vrot.slane %v1505, 2
      %v1628 = vrot.slane %v1506, 2
      %v1629 = vsel %vm758, %v1627, %v1628
      %v1630 = vrot.slane %v1507, 2
      %v1631 = vsel %vm758, %v1628, %v1630
      %v1632 = vrot.slane %v1508, 2
      %v1633 = vrot.slane %v1509, 2
      %v1634 = vsel %vm758, %v1632, %v1633
      %v1635 = vrot.slane %v1510, 2
      %v1636 = vsel %vm758, %v1633, %v1635
      %v1637 = vrot.slane %v1511, 2
      %v1638 = vrot.slane %v1512, 2
      %v1639 = vsel %vm758, %v1637, %v1638
      %v1640 = vrot.slane %v1513, 2
      %v1641 = vsel %vm758, %v1638, %v1640
      %v1674 = vmax.f32 %v1466, %v1564
      %v1675 = vmax.f32 %v1467, %v1566
      %v1676 = vmax.f32 %v1469, %v1569
      %v1677 = vmax.f32 %v1470, %v1571
      %v1678 = vmax.f32 %v1472, %v1574
      %v1679 = vmax.f32 %v1473, %v1576
      %v1680 = vmax.f32 %v1475, %v1579
      %v1681 = vmax.f32 %v1476, %v1581
      %v1682 = vmax.f32 %v1478, %v1584
      %v1683 = vmax.f32 %v1479, %v1586
      %v1684 = vmax.f32 %v1481, %v1589
      %v1685 = vmax.f32 %v1482, %v1591
      %v1686 = vmax.f32 %v1484, %v1594
      %v1687 = vmax.f32 %v1485, %v1596
      %v1688 = vmax.f32 %v1487, %v1599
      %v1689 = vmax.f32 %v1488, %v1601
      %v1690 = vmax.f32 %v1490, %v1604
      %v1691 = vmax.f32 %v1491, %v1606
      %v1692 = vmax.f32 %v1493, %v1609
      %v1693 = vmax.f32 %v1494, %v1611
      %v1694 = vmax.f32 %v1496, %v1614
      %v1695 = vmax.f32 %v1497, %v1616
      %v1696 = vmax.f32 %v1499, %v1619
      %v1697 = vmax.f32 %v1500, %v1621
      %v1698 = vmax.f32 %v1502, %v1624
      %v1699 = vmax.f32 %v1503, %v1626
      %v1700 = vmax.f32 %v1505, %v1629
      %v1701 = vmax.f32 %v1506, %v1631
      %v1702 = vmax.f32 %v1508, %v1634
      %v1703 = vmax.f32 %v1509, %v1636
      %v1704 = vmax.f32 %v1511, %v1639
      %v1705 = vmax.f32 %v1512, %v1641
      %v1706 = vrot.slane %v1242, 4
      %v1707 = vrot.slane %v1243, 4
      %v1708 = vsel %vm903, %v1706, %v1707
      %v1709 = vrot.slane %v1244, 4
      %v1710 = vsel %vm903, %v1707, %v1709
      %v1711 = vrot.slane %v1245, 4
      %v1712 = vrot.slane %v1246, 4
      %v1713 = vsel %vm903, %v1711, %v1712
      %v1714 = vrot.slane %v1247, 4
      %v1715 = vsel %vm903, %v1712, %v1714
      %v1716 = vrot.slane %v1248, 4
      %v1717 = vrot.slane %v1249, 4
      %v1718 = vsel %vm903, %v1716, %v1717
      %v1719 = vrot.slane %v1250, 4
      %v1720 = vsel %vm903, %v1717, %v1719
      %v1721 = vrot.slane %v1251, 4
      %v1722 = vrot.slane %v1252, 4
      %v1723 = vsel %vm903, %v1721, %v1722
      %v1724 = vrot.slane %v1253, 4
      %v1725 = vsel %vm903, %v1722, %v1724
      %v1726 = vrot.slane %v1254, 4
      %v1727 = vrot.slane %v1255, 4
      %v1728 = vsel %vm903, %v1726, %v1727
      %v1729 = vrot.slane %v1256, 4
      %v1730 = vsel %vm903, %v1727, %v1729
      %v1731 = vrot.slane %v1257, 4
      %v1732 = vrot.slane %v1258, 4
      %v1733 = vsel %vm903, %v1731, %v1732
      %v1734 = vrot.slane %v1259, 4
      %v1735 = vsel %vm903, %v1732, %v1734
      %v1736 = vrot.slane %v1260, 4
      %v1737 = vrot.slane %v1261, 4
      %v1738 = vsel %vm903, %v1736, %v1737
      %v1739 = vrot.slane %v1262, 4
      %v1740 = vsel %vm903, %v1737, %v1739
      %v1741 = vrot.slane %v1263, 4
      %v1742 = vrot.slane %v1264, 4
      %v1743 = vsel %vm903, %v1741, %v1742
      %v1744 = vrot.slane %v1265, 4
      %v1745 = vsel %vm903, %v1742, %v1744
      %v1746 = vrot.slane %v1266, 4
      %v1747 = vrot.slane %v1267, 4
      %v1748 = vsel %vm903, %v1746, %v1747
      %v1749 = vrot.slane %v1268, 4
      %v1750 = vsel %vm903, %v1747, %v1749
      %v1751 = vrot.slane %v1269, 4
      %v1752 = vrot.slane %v1270, 4
      %v1753 = vsel %vm903, %v1751, %v1752
      %v1754 = vrot.slane %v1271, 4
      %v1755 = vsel %vm903, %v1752, %v1754
      %v1756 = vrot.slane %v1272, 4
      %v1757 = vrot.slane %v1273, 4
      %v1758 = vsel %vm903, %v1756, %v1757
      %v1759 = vrot.slane %v1274, 4
      %v1760 = vsel %vm903, %v1757, %v1759
      %v1761 = vrot.slane %v1275, 4
      %v1762 = vrot.slane %v1276, 4
      %v1763 = vsel %vm903, %v1761, %v1762
      %v1764 = vrot.slane %v1277, 4
      %v1765 = vsel %vm903, %v1762, %v1764
      %v1766 = vrot.slane %v1278, 4
      %v1767 = vrot.slane %v1279, 4
      %v1768 = vsel %vm903, %v1766, %v1767
      %v1769 = vrot.slane %v1280, 4
      %v1770 = vsel %vm903, %v1767, %v1769
      %v1771 = vrot.slane %v1281, 4
      %v1772 = vrot.slane %v1282, 4
      %v1773 = vsel %vm903, %v1771, %v1772
      %v1774 = vrot.slane %v1283, 4
      %v1775 = vsel %vm903, %v1772, %v1774
      %v1776 = vrot.slane %v1284, 4
      %v1777 = vrot.slane %v1285, 4
      %v1778 = vsel %vm903, %v1776, %v1777
      %v1779 = vrot.slane %v1286, 4
      %v1780 = vsel %vm903, %v1777, %v1779
      %v1781 = vrot.slane %v1287, 4
      %v1782 = vrot.slane %v1288, 4
      %v1783 = vsel %vm903, %v1781, %v1782
      %v1784 = vrot.slane %v1289, 4
      %v1785 = vsel %vm903, %v1782, %v1784
      %v1818 = vmax.f32 %v1674, %v1708
      %v1819 = vmax.f32 %v1675, %v1710
      %v1820 = vmax.f32 %v1676, %v1713
      %v1821 = vmax.f32 %v1677, %v1715
      %v1822 = vmax.f32 %v1678, %v1718
      %v1823 = vmax.f32 %v1679, %v1720
      %v1824 = vmax.f32 %v1680, %v1723
      %v1825 = vmax.f32 %v1681, %v1725
      %v1826 = vmax.f32 %v1682, %v1728
      %v1827 = vmax.f32 %v1683, %v1730
      %v1828 = vmax.f32 %v1684, %v1733
      %v1829 = vmax.f32 %v1685, %v1735
      %v1830 = vmax.f32 %v1686, %v1738
      %v1831 = vmax.f32 %v1687, %v1740
      %v1832 = vmax.f32 %v1688, %v1743
      %v1833 = vmax.f32 %v1689, %v1745
      %v1834 = vmax.f32 %v1690, %v1748
      %v1835 = vmax.f32 %v1691, %v1750
      %v1836 = vmax.f32 %v1692, %v1753
      %v1837 = vmax.f32 %v1693, %v1755
      %v1838 = vmax.f32 %v1694, %v1758
      %v1839 = vmax.f32 %v1695, %v1760
      %v1840 = vmax.f32 %v1696, %v1763
      %v1841 = vmax.f32 %v1697, %v1765
      %v1842 = vmax.f32 %v1698, %v1768
      %v1843 = vmax.f32 %v1699, %v1770
      %v1844 = vmax.f32 %v1700, %v1773
      %v1845 = vmax.f32 %v1701, %v1775
      %v1846 = vmax.f32 %v1702, %v1778
      %v1847 = vmax.f32 %v1703, %v1780
      %v1848 = vmax.f32 %v1704, %v1783
      %v1849 = vmax.f32 %v1705, %v1785
      %1850 = vst.msk [vmem:[%s242 + $0x2] sm:$0xff] %vm180, %v1818
      %1851 = vst.msk [vmem:[%s242 + $0xa] sm:$0xff] %vm180, %v1819
      %1852 = vst.msk [vmem:[%s242 + $0x1a] sm:$0xff] %vm180, %v1820
      %1853 = vst.msk [vmem:[%s242 + $0x22] sm:$0xff] %vm180, %v1821
      %1854 = vst.msk [vmem:[%s242 + $0x32] sm:$0xff] %vm180, %v1822
      %1855 = vst.msk [vmem:[%s242 + $0x3a] sm:$0xff] %vm180, %v1823
      %1856 = vst.msk [vmem:[%s242 + $0x4a] sm:$0xff] %vm180, %v1824
      %1857 = vst.msk [vmem:[%s242 + $0x52] sm:$0xff] %vm180, %v1825
      %1858 = vst.msk [vmem:[%s242 + $0x62] sm:$0xff] %vm180, %v1826
      %1859 = vst.msk [vmem:[%s242 + $0x6a] sm:$0xff] %vm180, %v1827
      %1860 = vst.msk [vmem:[%s242 + $0x7a] sm:$0xff] %vm180, %v1828
      %1861 = vst.msk [vmem:[%s242 + $0x82] sm:$0xff] %vm180, %v1829
      %1862 = vst.msk [vmem:[%s242 + $0x92] sm:$0xff] %vm180, %v1830
      %1863 = vst.msk [vmem:[%s242 + $0x9a] sm:$0xff] %vm180, %v1831
      %1864 = vst.msk [vmem:[%s242 + $0xaa] sm:$0xff] %vm180, %v1832
      %1865 = vst.msk [vmem:[%s242 + $0xb2] sm:$0xff] %vm180, %v1833
      %1866 = vst.msk [vmem:[%s242 + $0xc2] sm:$0xff] %vm180, %v1834
      %1867 = vst.msk [vmem:[%s242 + $0xca] sm:$0xff] %vm180, %v1835
      %1868 = vst.msk [vmem:[%s242 + $0xda] sm:$0xff] %vm180, %v1836
      %1869 = vst.msk [vmem:[%s242 + $0xe2] sm:$0xff] %vm180, %v1837
      %1870 = vst.msk [vmem:[%s242 + $0xf2] sm:$0xff] %vm180, %v1838
      %1871 = vst.msk [vmem:[%s242 + $0xfa] sm:$0xff] %vm180, %v1839
      %1872 = vst.msk [vmem:[%s242 + $0x10a] sm:$0xff] %vm180, %v1840
      %1873 = vst.msk [vmem:[%s242 + $0x112] sm:$0xff] %vm180, %v1841
      %1874 = vst.msk [vmem:[%s242 + $0x122] sm:$0xff] %vm180, %v1842
      %1875 = vst.msk [vmem:[%s242 + $0x12a] sm:$0xff] %vm180, %v1843
      %1876 = vst.msk [vmem:[%s242 + $0x13a] sm:$0xff] %vm180, %v1844
      %1877 = vst.msk [vmem:[%s242 + $0x142] sm:$0xff] %vm180, %v1845
      %1878 = vst.msk [vmem:[%s242 + $0x152] sm:$0xff] %vm180, %v1846
      %1879 = vst.msk [vmem:[%s242 + $0x15a] sm:$0xff] %vm180, %v1847
      %1880 = vst.msk [vmem:[%s242 + $0x16a] sm:$0xff] %vm180, %v1848
      %1881 = vst.msk [vmem:[%s242 + $0x172] sm:$0xff] %vm180, %v1849
      %v1882 = vld [vmem:[#allocation2] sm:$0xff]
      %v1883 = vld [vmem:[#allocation2 + $0x8] sm:$0xff]
      %v1884 = vld [vmem:[#allocation2 + $0x10] sm:$0xf]
      %v1885 = vld [vmem:[#allocation2 + $0x18] sm:$0xff]
      %v1886 = vld [vmem:[#allocation2 + $0x20] sm:$0xff]
      %v1887 = vld [vmem:[#allocation2 + $0x28] sm:$0xf]
      %v1888 = vld [vmem:[#allocation2 + $0x30] sm:$0xff]
      %v1889 = vld [vmem:[#allocation2 + $0x38] sm:$0xff]
      %v1890 = vld [vmem:[#allocation2 + $0x40] sm:$0xf]
      %v1891 = vld [vmem:[#allocation2 + $0x48] sm:$0xff]
      %v1892 = vld [vmem:[#allocation2 + $0x50] sm:$0xff]
      %v1893 = vld [vmem:[#allocation2 + $0x58] sm:$0xf]
      %v1894 = vld [vmem:[#allocation2 + $0x60] sm:$0xff]
      %v1895 = vld [vmem:[#allocation2 + $0x68] sm:$0xff]
      %v1896 = vld [vmem:[#allocation2 + $0x70] sm:$0xf]
      %v1897 = vld [vmem:[#allocation2 + $0x78] sm:$0xff]
      %v1898 = vld [vmem:[#allocation2 + $0x80] sm:$0xff]
      %v1899 = vld [vmem:[#allocation2 + $0x88] sm:$0xf]
      %v1900 = vld [vmem:[#allocation2 + $0x90] sm:$0xff]
      %v1901 = vld [vmem:[#allocation2 + $0x98] sm:$0xff]
      %v1902 = vld [vmem:[#allocation2 + $0xa0] sm:$0xf]
      %v1903 = vld [vmem:[#allocation2 + $0xa8] sm:$0xff]
      %v1904 = vld [vmem:[#allocation2 + $0xb0] sm:$0xff]
      %v1905 = vld [vmem:[#allocation2 + $0xb8] sm:$0xf]
      %v1906 = vld [vmem:[#allocation2 + $0xc0] sm:$0xff]
      %v1907 = vld [vmem:[#allocation2 + $0xc8] sm:$0xff]
      %v1908 = vld [vmem:[#allocation2 + $0xd0] sm:$0xf]
      %v1909 = vld [vmem:[#allocation2 + $0xd8] sm:$0xff]
      %v1910 = vld [vmem:[#allocation2 + $0xe0] sm:$0xff]
      %v1911 = vld [vmem:[#allocation2 + $0xe8] sm:$0xf]
      %v1912 = vld [vmem:[#allocation2 + $0xf0] sm:$0xff]
      %v1913 = vld [vmem:[#allocation2 + $0xf8] sm:$0xff]
      %v1914 = vld [vmem:[#allocation2 + $0x100] sm:$0xf]
      %v1915 = vld [vmem:[#allocation2 + $0x108] sm:$0xff]
      %v1916 = vld [vmem:[#allocation2 + $0x110] sm:$0xff]
      %v1917 = vld [vmem:[#allocation2 + $0x118] sm:$0xf]
      %v1918 = vld [vmem:[#allocation2 + $0x120] sm:$0xff]
      %v1919 = vld [vmem:[#allocation2 + $0x128] sm:$0xff]
      %v1920 = vld [vmem:[#allocation2 + $0x130] sm:$0xf]
      %v1921 = vld [vmem:[#allocation2 + $0x138] sm:$0xff]
      %v1922 = vld [vmem:[#allocation2 + $0x140] sm:$0xff]
      %v1923 = vld [vmem:[#allocation2 + $0x148] sm:$0xf]
      %v1924 = vld [vmem:[#allocation2 + $0x150] sm:$0xff]
      %v1925 = vld [vmem:[#allocation2 + $0x158] sm:$0xff]
      %v1926 = vld [vmem:[#allocation2 + $0x160] sm:$0xf]
      %v1927 = vld [vmem:[#allocation2 + $0x168] sm:$0xff]
      %v1928 = vld [vmem:[#allocation2 + $0x170] sm:$0xff]
      %v1929 = vld [vmem:[#allocation2 + $0x178] sm:$0xf]
      %v1930 = vld [vmem:[#allocation2 + $0x180] sm:$0xff]
      %v1931 = vld [vmem:[#allocation2 + $0x188] sm:$0xff]
      %v1932 = vld [vmem:[#allocation2 + $0x190] sm:$0xf]
      %v1933 = vld [vmem:[#allocation2 + $0x198] sm:$0xff]
      %v1934 = vld [vmem:[#allocation2 + $0x1a0] sm:$0xff]
      %v1935 = vld [vmem:[#allocation2 + $0x1a8] sm:$0xf]
      %v1936 = vld [vmem:[#allocation2 + $0x1b0] sm:$0xff]
      %v1937 = vld [vmem:[#allocation2 + $0x1b8] sm:$0xff]
      %v1938 = vld [vmem:[#allocation2 + $0x1c0] sm:$0xf]
      %v1939 = vld [vmem:[#allocation2 + $0x1c8] sm:$0xff]
      %v1940 = vld [vmem:[#allocation2 + $0x1d0] sm:$0xff]
      %v1941 = vld [vmem:[#allocation2 + $0x1d8] sm:$0xf]
      %v1942 = vmax.f32 %v1882, %v1885
      %v1943 = vmax.f32 %v1883, %v1886
      %v1944 = vmax.f32 %v1884, %v1887
      %v1945 = vmax.f32 %v1885, %v1888
      %v1946 = vmax.f32 %v1886, %v1889
      %v1947 = vmax.f32 %v1887, %v1890
      %v1948 = vmax.f32 %v1888, %v1891
      %v1949 = vmax.f32 %v1889, %v1892
      %v1950 = vmax.f32 %v1890, %v1893
      %v1951 = vmax.f32 %v1891, %v1894
      %v1952 = vmax.f32 %v1892, %v1895
      %v1953 = vmax.f32 %v1893, %v1896
      %v1954 = vmax.f32 %v1894, %v1897
      %v1955 = vmax.f32 %v1895, %v1898
      %v1956 = vmax.f32 %v1896, %v1899
      %v1957 = vmax.f32 %v1897, %v1900
      %v1958 = vmax.f32 %v1898, %v1901
      %v1959 = vmax.f32 %v1899, %v1902
      %v1960 = vmax.f32 %v1900, %v1903
      %v1961 = vmax.f32 %v1901, %v1904
      %v1962 = vmax.f32 %v1902, %v1905
      %v1963 = vmax.f32 %v1903, %v1906
      %v1964 = vmax.f32 %v1904, %v1907
      %v1965 = vmax.f32 %v1905, %v1908
      %v1966 = vmax.f32 %v1906, %v1909
      %v1967 = vmax.f32 %v1907, %v1910
      %v1968 = vmax.f32 %v1908, %v1911
      %v1969 = vmax.f32 %v1909, %v1912
      %v1970 = vmax.f32 %v1910, %v1913
      %v1971 = vmax.f32 %v1911, %v1914
      %v1972 = vmax.f32 %v1912, %v1915
      %v1973 = vmax.f32 %v1913, %v1916
      %v1974 = vmax.f32 %v1914, %v1917
      %v1975 = vmax.f32 %v1915, %v1918
      %v1976 = vmax.f32 %v1916, %v1919
      %v1977 = vmax.f32 %v1917, %v1920
      %v1978 = vmax.f32 %v1918, %v1921
      %v1979 = vmax.f32 %v1919, %v1922
      %v1980 = vmax.f32 %v1920, %v1923
      %v1981 = vmax.f32 %v1921, %v1924
      %v1982 = vmax.f32 %v1922, %v1925
      %v1983 = vmax.f32 %v1923, %v1926
      %v1984 = vmax.f32 %v1924, %v1927
      %v1985 = vmax.f32 %v1925, %v1928
      %v1986 = vmax.f32 %v1926, %v1929
      %v1987 = vmax.f32 %v1927, %v1930
      %v1988 = vmax.f32 %v1928, %v1931
      %v1989 = vmax.f32 %v1929, %v1932
      %v1990 = vmax.f32 %v1930, %v1933
      %v1991 = vmax.f32 %v1931, %v1934
      %v1992 = vmax.f32 %v1932, %v1935
      %v1993 = vmax.f32 %v1933, %v1936
      %v1994 = vmax.f32 %v1934, %v1937
      %v1995 = vmax.f32 %v1935, %v1938
      %v1996 = vmax.f32 %v1942, %v1948
      %v1997 = vmax.f32 %v1943, %v1949
      %v1998 = vmax.f32 %v1944, %v1950
      %v1999 = vmax.f32 %v1945, %v1951
      %v2000 = vmax.f32 %v1946, %v1952
      %v2001 = vmax.f32 %v1947, %v1953
      %v2002 = vmax.f32 %v1948, %v1954
      %v2003 = vmax.f32 %v1949, %v1955
      %v2004 = vmax.f32 %v1950, %v1956
      %v2005 = vmax.f32 %v1951, %v1957
      %v2006 = vmax.f32 %v1952, %v1958
      %v2007 = vmax.f32 %v1953, %v1959
      %v2008 = vmax.f32 %v1954, %v1960
      %v2009 = vmax.f32 %v1955, %v1961
      %v2010 = vmax.f32 %v1956, %v1962
      %v2011 = vmax.f32 %v1957, %v1963
      %v2012 = vmax.f32 %v1958, %v1964
      %v2013 = vmax.f32 %v1959, %v1965
      %v2014 = vmax.f32 %v1960, %v1966
      %v2015 = vmax.f32 %v1961, %v1967
      %v2016 = vmax.f32 %v1962, %v1968
      %v2017 = vmax.f32 %v1963, %v1969
      %v2018 = vmax.f32 %v1964, %v1970
      %v2019 = vmax.f32 %v1965, %v1971
      %v2020 = vmax.f32 %v1966, %v1972
      %v2021 = vmax.f32 %v1967, %v1973
      %v2022 = vmax.f32 %v1968, %v1974
      %v2023 = vmax.f32 %v1969, %v1975
      %v2024 = vmax.f32 %v1970, %v1976
      %v2025 = vmax.f32 %v1971, %v1977
      %v2026 = vmax.f32 %v1972, %v1978
      %v2027 = vmax.f32 %v1973, %v1979
      %v2028 = vmax.f32 %v1974, %v1980
      %v2029 = vmax.f32 %v1975, %v1981
      %v2030 = vmax.f32 %v1976, %v1982
      %v2031 = vmax.f32 %v1977, %v1983
      %v2032 = vmax.f32 %v1978, %v1984
      %v2033 = vmax.f32 %v1979, %v1985
      %v2034 = vmax.f32 %v1980, %v1986
      %v2035 = vmax.f32 %v1981, %v1987
      %v2036 = vmax.f32 %v1982, %v1988
      %v2037 = vmax.f32 %v1983, %v1989
      %v2038 = vmax.f32 %v1984, %v1990
      %v2039 = vmax.f32 %v1985, %v1991
      %v2040 = vmax.f32 %v1986, %v1992
      %v2041 = vmax.f32 %v1987, %v1993
      %v2042 = vmax.f32 %v1988, %v1994
      %v2043 = vmax.f32 %v1989, %v1995
      %v2044 = vmax.f32 %v1996, %v1894
      %v2045 = vmax.f32 %v1997, %v1895
      %v2046 = vmax.f32 %v1998, %v1896
      %v2047 = vmax.f32 %v1999, %v1897
      %v2048 = vmax.f32 %v2000, %v1898
      %v2049 = vmax.f32 %v2001, %v1899
      %v2050 = vmax.f32 %v2002, %v1900
      %v2051 = vmax.f32 %v2003, %v1901
      %v2052 = vmax.f32 %v2004, %v1902
      %v2053 = vmax.f32 %v2005, %v1903
      %v2054 = vmax.f32 %v2006, %v1904
      %v2055 = vmax.f32 %v2007, %v1905
      %v2056 = vmax.f32 %v2008, %v1906
      %v2057 = vmax.f32 %v2009, %v1907
      %v2058 = vmax.f32 %v2010, %v1908
      %v2059 = vmax.f32 %v2011, %v1909
      %v2060 = vmax.f32 %v2012, %v1910
      %v2061 = vmax.f32 %v2013, %v1911
      %v2062 = vmax.f32 %v2014, %v1912
      %v2063 = vmax.f32 %v2015, %v1913
      %v2064 = vmax.f32 %v2016, %v1914
      %v2065 = vmax.f32 %v2017, %v1915
      %v2066 = vmax.f32 %v2018, %v1916
      %v2067 = vmax.f32 %v2019, %v1917
      %v2068 = vmax.f32 %v2020, %v1918
      %v2069 = vmax.f32 %v2021, %v1919
      %v2070 = vmax.f32 %v2022, %v1920
      %v2071 = vmax.f32 %v2023, %v1921
      %v2072 = vmax.f32 %v2024, %v1922
      %v2073 = vmax.f32 %v2025, %v1923
      %v2074 = vmax.f32 %v2026, %v1924
      %v2075 = vmax.f32 %v2027, %v1925
      %v2076 = vmax.f32 %v2028, %v1926
      %v2077 = vmax.f32 %v2029, %v1927
      %v2078 = vmax.f32 %v2030, %v1928
      %v2079 = vmax.f32 %v2031, %v1929
      %v2080 = vmax.f32 %v2032, %v1930
      %v2081 = vmax.f32 %v2033, %v1931
      %v2082 = vmax.f32 %v2034, %v1932
      %v2083 = vmax.f32 %v2035, %v1933
      %v2084 = vmax.f32 %v2036, %v1934
      %v2085 = vmax.f32 %v2037, %v1935
      %v2086 = vmax.f32 %v2038, %v1936
      %v2087 = vmax.f32 %v2039, %v1937
      %v2088 = vmax.f32 %v2040, %v1938
      %v2089 = vmax.f32 %v2041, %v1939
      %v2090 = vmax.f32 %v2042, %v1940
      %v2091 = vmax.f32 %v2043, %v1941
      %v2140 = vrot.slane %v2044, 1
      %v2141 = vrot.slane %v2045, 1
      %v2142 = vsel %vm533, %v2140, %v2141
      %v2143 = vrot.slane %v2046, 1
      %v2144 = vsel %vm533, %v2141, %v2143
      %v2145 = vrot.slane %v2047, 1
      %v2146 = vrot.slane %v2048, 1
      %v2147 = vsel %vm533, %v2145, %v2146
      %v2148 = vrot.slane %v2049, 1
      %v2149 = vsel %vm533, %v2146, %v2148
      %v2150 = vrot.slane %v2050, 1
      %v2151 = vrot.slane %v2051, 1
      %v2152 = vsel %vm533, %v2150, %v2151
      %v2153 = vrot.slane %v2052, 1
      %v2154 = vsel %vm533, %v2151, %v2153
      %v2155 = vrot.slane %v2053, 1
      %v2156 = vrot.slane %v2054, 1
      %v2157 = vsel %vm533, %v2155, %v2156
      %v2158 = vrot.slane %v2055, 1
      %v2159 = vsel %vm533, %v2156, %v2158
      %v2160 = vrot.slane %v2056, 1
      %v2161 = vrot.slane %v2057, 1
      %v2162 = vsel %vm533, %v2160, %v2161
      %v2163 = vrot.slane %v2058, 1
      %v2164 = vsel %vm533, %v2161, %v2163
      %v2165 = vrot.slane %v2059, 1
      %v2166 = vrot.slane %v2060, 1
      %v2167 = vsel %vm533, %v2165, %v2166
      %v2168 = vrot.slane %v2061, 1
      %v2169 = vsel %vm533, %v2166, %v2168
      %v2170 = vrot.slane %v2062, 1
      %v2171 = vrot.slane %v2063, 1
      %v2172 = vsel %vm533, %v2170, %v2171
      %v2173 = vrot.slane %v2064, 1
      %v2174 = vsel %vm533, %v2171, %v2173
      %v2175 = vrot.slane %v2065, 1
      %v2176 = vrot.slane %v2066, 1
      %v2177 = vsel %vm533, %v2175, %v2176
      %v2178 = vrot.slane %v2067, 1
      %v2179 = vsel %vm533, %v2176, %v2178
      %v2180 = vrot.slane %v2068, 1
      %v2181 = vrot.slane %v2069, 1
      %v2182 = vsel %vm533, %v2180, %v2181
      %v2183 = vrot.slane %v2070, 1
      %v2184 = vsel %vm533, %v2181, %v2183
      %v2185 = vrot.slane %v2071, 1
      %v2186 = vrot.slane %v2072, 1
      %v2187 = vsel %vm533, %v2185, %v2186
      %v2188 = vrot.slane %v2073, 1
      %v2189 = vsel %vm533, %v2186, %v2188
      %v2190 = vrot.slane %v2074, 1
      %v2191 = vrot.slane %v2075, 1
      %v2192 = vsel %vm533, %v2190, %v2191
      %v2193 = vrot.slane %v2076, 1
      %v2194 = vsel %vm533, %v2191, %v2193
      %v2195 = vrot.slane %v2077, 1
      %v2196 = vrot.slane %v2078, 1
      %v2197 = vsel %vm533, %v2195, %v2196
      %v2198 = vrot.slane %v2079, 1
      %v2199 = vsel %vm533, %v2196, %v2198
      %v2200 = vrot.slane %v2080, 1
      %v2201 = vrot.slane %v2081, 1
      %v2202 = vsel %vm533, %v2200, %v2201
      %v2203 = vrot.slane %v2082, 1
      %v2204 = vsel %vm533, %v2201, %v2203
      %v2205 = vrot.slane %v2083, 1
      %v2206 = vrot.slane %v2084, 1
      %v2207 = vsel %vm533, %v2205, %v2206
      %v2208 = vrot.slane %v2085, 1
      %v2209 = vsel %vm533, %v2206, %v2208
      %v2210 = vrot.slane %v2086, 1
      %v2211 = vrot.slane %v2087, 1
      %v2212 = vsel %vm533, %v2210, %v2211
      %v2213 = vrot.slane %v2088, 1
      %v2214 = vsel %vm533, %v2211, %v2213
      %v2215 = vrot.slane %v2089, 1
      %v2216 = vrot.slane %v2090, 1
      %v2217 = vsel %vm533, %v2215, %v2216
      %v2218 = vrot.slane %v2091, 1
      %v2219 = vsel %vm533, %v2216, %v2218
      %v2268 = vmax.f32 %v2044, %v2142
      %v2269 = vmax.f32 %v2045, %v2144
      %v2270 = vmax.f32 %v2046, %v2143
      %v2271 = vmax.f32 %v2047, %v2147
      %v2272 = vmax.f32 %v2048, %v2149
      %v2273 = vmax.f32 %v2049, %v2148
      %v2274 = vmax.f32 %v2050, %v2152
      %v2275 = vmax.f32 %v2051, %v2154
      %v2276 = vmax.f32 %v2052, %v2153
      %v2277 = vmax.f32 %v2053, %v2157
      %v2278 = vmax.f32 %v2054, %v2159
      %v2279 = vmax.f32 %v2055, %v2158
      %v2280 = vmax.f32 %v2056, %v2162
      %v2281 = vmax.f32 %v2057, %v2164
      %v2282 = vmax.f32 %v2058, %v2163
      %v2283 = vmax.f32 %v2059, %v2167
      %v2284 = vmax.f32 %v2060, %v2169
      %v2285 = vmax.f32 %v2061, %v2168
      %v2286 = vmax.f32 %v2062, %v2172
      %v2287 = vmax.f32 %v2063, %v2174
      %v2288 = vmax.f32 %v2064, %v2173
      %v2289 = vmax.f32 %v2065, %v2177
      %v2290 = vmax.f32 %v2066, %v2179
      %v2291 = vmax.f32 %v2067, %v2178
      %v2292 = vmax.f32 %v2068, %v2182
      %v2293 = vmax.f32 %v2069, %v2184
      %v2294 = vmax.f32 %v2070, %v2183
      %v2295 = vmax.f32 %v2071, %v2187
      %v2296 = vmax.f32 %v2072, %v2189
      %v2297 = vmax.f32 %v2073, %v2188
      %v2298 = vmax.f32 %v2074, %v2192
      %v2299 = vmax.f32 %v2075, %v2194
      %v2300 = vmax.f32 %v2076, %v2193
      %v2301 = vmax.f32 %v2077, %v2197
      %v2302 = vmax.f32 %v2078, %v2199
      %v2303 = vmax.f32 %v2079, %v2198
      %v2304 = vmax.f32 %v2080, %v2202
      %v2305 = vmax.f32 %v2081, %v2204
      %v2306 = vmax.f32 %v2082, %v2203
      %v2307 = vmax.f32 %v2083, %v2207
      %v2308 = vmax.f32 %v2084, %v2209
      %v2309 = vmax.f32 %v2085, %v2208
      %v2310 = vmax.f32 %v2086, %v2212
      %v2311 = vmax.f32 %v2087, %v2214
      %v2312 = vmax.f32 %v2088, %v2213
      %v2313 = vmax.f32 %v2089, %v2217
      %v2314 = vmax.f32 %v2090, %v2219
      %v2315 = vmax.f32 %v2091, %v2218
      %v2364 = vrot.slane %v2268, 2
      %v2365 = vrot.slane %v2269, 2
      %v2366 = vsel %vm758, %v2364, %v2365
      %v2367 = vrot.slane %v2270, 2
      %v2368 = vsel %vm758, %v2365, %v2367
      %v2369 = vrot.slane %v2271, 2
      %v2370 = vrot.slane %v2272, 2
      %v2371 = vsel %vm758, %v2369, %v2370
      %v2372 = vrot.slane %v2273, 2
      %v2373 = vsel %vm758, %v2370, %v2372
      %v2374 = vrot.slane %v2274, 2
      %v2375 = vrot.slane %v2275, 2
      %v2376 = vsel %vm758, %v2374, %v2375
      %v2377 = vrot.slane %v2276, 2
      %v2378 = vsel %vm758, %v2375, %v2377
      %v2379 = vrot.slane %v2277, 2
      %v2380 = vrot.slane %v2278, 2
      %v2381 = vsel %vm758, %v2379, %v2380
      %v2382 = vrot.slane %v2279, 2
      %v2383 = vsel %vm758, %v2380, %v2382
      %v2384 = vrot.slane %v2280, 2
      %v2385 = vrot.slane %v2281, 2
      %v2386 = vsel %vm758, %v2384, %v2385
      %v2387 = vrot.slane %v2282, 2
      %v2388 = vsel %vm758, %v2385, %v2387
      %v2389 = vrot.slane %v2283, 2
      %v2390 = vrot.slane %v2284, 2
      %v2391 = vsel %vm758, %v2389, %v2390
      %v2392 = vrot.slane %v2285, 2
      %v2393 = vsel %vm758, %v2390, %v2392
      %v2394 = vrot.slane %v2286, 2
      %v2395 = vrot.slane %v2287, 2
      %v2396 = vsel %vm758, %v2394, %v2395
      %v2397 = vrot.slane %v2288, 2
      %v2398 = vsel %vm758, %v2395, %v2397
      %v2399 = vrot.slane %v2289, 2
      %v2400 = vrot.slane %v2290, 2
      %v2401 = vsel %vm758, %v2399, %v2400
      %v2402 = vrot.slane %v2291, 2
      %v2403 = vsel %vm758, %v2400, %v2402
      %v2404 = vrot.slane %v2292, 2
      %v2405 = vrot.slane %v2293, 2
      %v2406 = vsel %vm758, %v2404, %v2405
      %v2407 = vrot.slane %v2294, 2
      %v2408 = vsel %vm758, %v2405, %v2407
      %v2409 = vrot.slane %v2295, 2
      %v2410 = vrot.slane %v2296, 2
      %v2411 = vsel %vm758, %v2409, %v2410
      %v2412 = vrot.slane %v2297, 2
      %v2413 = vsel %vm758, %v2410, %v2412
      %v2414 = vrot.slane %v2298, 2
      %v2415 = vrot.slane %v2299, 2
      %v2416 = vsel %vm758, %v2414, %v2415
      %v2417 = vrot.slane %v2300, 2
      %v2418 = vsel %vm758, %v2415, %v2417
      %v2419 = vrot.slane %v2301, 2
      %v2420 = vrot.slane %v2302, 2
      %v2421 = vsel %vm758, %v2419, %v2420
      %v2422 = vrot.slane %v2303, 2
      %v2423 = vsel %vm758, %v2420, %v2422
      %v2424 = vrot.slane %v2304, 2
      %v2425 = vrot.slane %v2305, 2
      %v2426 = vsel %vm758, %v2424, %v2425
      %v2427 = vrot.slane %v2306, 2
      %v2428 = vsel %vm758, %v2425, %v2427
      %v2429 = vrot.slane %v2307, 2
      %v2430 = vrot.slane %v2308, 2
      %v2431 = vsel %vm758, %v2429, %v2430
      %v2432 = vrot.slane %v2309, 2
      %v2433 = vsel %vm758, %v2430, %v2432
      %v2434 = vrot.slane %v2310, 2
      %v2435 = vrot.slane %v2311, 2
      %v2436 = vsel %vm758, %v2434, %v2435
      %v2437 = vrot.slane %v2312, 2
      %v2438 = vsel %vm758, %v2435, %v2437
      %v2439 = vrot.slane %v2313, 2
      %v2440 = vrot.slane %v2314, 2
      %v2441 = vsel %vm758, %v2439, %v2440
      %v2442 = vrot.slane %v2315, 2
      %v2443 = vsel %vm758, %v2440, %v2442
      %v2476 = vmax.f32 %v2268, %v2366
      %v2477 = vmax.f32 %v2269, %v2368
      %v2478 = vmax.f32 %v2271, %v2371
      %v2479 = vmax.f32 %v2272, %v2373
      %v2480 = vmax.f32 %v2274, %v2376
      %v2481 = vmax.f32 %v2275, %v2378
      %v2482 = vmax.f32 %v2277, %v2381
      %v2483 = vmax.f32 %v2278, %v2383
      %v2484 = vmax.f32 %v2280, %v2386
      %v2485 = vmax.f32 %v2281, %v2388
      %v2486 = vmax.f32 %v2283, %v2391
      %v2487 = vmax.f32 %v2284, %v2393
      %v2488 = vmax.f32 %v2286, %v2396
      %v2489 = vmax.f32 %v2287, %v2398
      %v2490 = vmax.f32 %v2289, %v2401
      %v2491 = vmax.f32 %v2290, %v2403
      %v2492 = vmax.f32 %v2292, %v2406
      %v2493 = vmax.f32 %v2293, %v2408
      %v2494 = vmax.f32 %v2295, %v2411
      %v2495 = vmax.f32 %v2296, %v2413
      %v2496 = vmax.f32 %v2298, %v2416
      %v2497 = vmax.f32 %v2299, %v2418
      %v2498 = vmax.f32 %v2301, %v2421
      %v2499 = vmax.f32 %v2302, %v2423
      %v2500 = vmax.f32 %v2304, %v2426
      %v2501 = vmax.f32 %v2305, %v2428
      %v2502 = vmax.f32 %v2307, %v2431
      %v2503 = vmax.f32 %v2308, %v2433
      %v2504 = vmax.f32 %v2310, %v2436
      %v2505 = vmax.f32 %v2311, %v2438
      %v2506 = vmax.f32 %v2313, %v2441
      %v2507 = vmax.f32 %v2314, %v2443
      %v2508 = vrot.slane %v2044, 4
      %v2509 = vrot.slane %v2045, 4
      %v2510 = vsel %vm903, %v2508, %v2509
      %v2511 = vrot.slane %v2046, 4
      %v2512 = vsel %vm903, %v2509, %v2511
      %v2513 = vrot.slane %v2047, 4
      %v2514 = vrot.slane %v2048, 4
      %v2515 = vsel %vm903, %v2513, %v2514
      %v2516 = vrot.slane %v2049, 4
      %v2517 = vsel %vm903, %v2514, %v2516
      %v2518 = vrot.slane %v2050, 4
      %v2519 = vrot.slane %v2051, 4
      %v2520 = vsel %vm903, %v2518, %v2519
      %v2521 = vrot.slane %v2052, 4
      %v2522 = vsel %vm903, %v2519, %v2521
      %v2523 = vrot.slane %v2053, 4
      %v2524 = vrot.slane %v2054, 4
      %v2525 = vsel %vm903, %v2523, %v2524
      %v2526 = vrot.slane %v2055, 4
      %v2527 = vsel %vm903, %v2524, %v2526
      %v2528 = vrot.slane %v2056, 4
      %v2529 = vrot.slane %v2057, 4
      %v2530 = vsel %vm903, %v2528, %v2529
      %v2531 = vrot.slane %v2058, 4
      %v2532 = vsel %vm903, %v2529, %v2531
      %v2533 = vrot.slane %v2059, 4
      %v2534 = vrot.slane %v2060, 4
      %v2535 = vsel %vm903, %v2533, %v2534
      %v2536 = vrot.slane %v2061, 4
      %v2537 = vsel %vm903, %v2534, %v2536
      %v2538 = vrot.slane %v2062, 4
      %v2539 = vrot.slane %v2063, 4
      %v2540 = vsel %vm903, %v2538, %v2539
      %v2541 = vrot.slane %v2064, 4
      %v2542 = vsel %vm903, %v2539, %v2541
      %v2543 = vrot.slane %v2065, 4
      %v2544 = vrot.slane %v2066, 4
      %v2545 = vsel %vm903, %v2543, %v2544
      %v2546 = vrot.slane %v2067, 4
      %v2547 = vsel %vm903, %v2544, %v2546
      %v2548 = vrot.slane %v2068, 4
      %v2549 = vrot.slane %v2069, 4
      %v2550 = vsel %vm903, %v2548, %v2549
      %v2551 = vrot.slane %v2070, 4
      %v2552 = vsel %vm903, %v2549, %v2551
      %v2553 = vrot.slane %v2071, 4
      %v2554 = vrot.slane %v2072, 4
      %v2555 = vsel %vm903, %v2553, %v2554
      %v2556 = vrot.slane %v2073, 4
      %v2557 = vsel %vm903, %v2554, %v2556
      %v2558 = vrot.slane %v2074, 4
      %v2559 = vrot.slane %v2075, 4
      %v2560 = vsel %vm903, %v2558, %v2559
      %v2561 = vrot.slane %v2076, 4
      %v2562 = vsel %vm903, %v2559, %v2561
      %v2563 = vrot.slane %v2077, 4
      %v2564 = vrot.slane %v2078, 4
      %v2565 = vsel %vm903, %v2563, %v2564
      %v2566 = vrot.slane %v2079, 4
      %v2567 = vsel %vm903, %v2564, %v2566
      %v2568 = vrot.slane %v2080, 4
      %v2569 = vrot.slane %v2081, 4
      %v2570 = vsel %vm903, %v2568, %v2569
      %v2571 = vrot.slane %v2082, 4
      %v2572 = vsel %vm903, %v2569, %v2571
      %v2573 = vrot.slane %v2083, 4
      %v2574 = vrot.slane %v2084, 4
      %v2575 = vsel %vm903, %v2573, %v2574
      %v2576 = vrot.slane %v2085, 4
      %v2577 = vsel %vm903, %v2574, %v2576
      %v2578 = vrot.slane %v2086, 4
      %v2579 = vrot.slane %v2087, 4
      %v2580 = vsel %vm903, %v2578, %v2579
      %v2581 = vrot.slane %v2088, 4
      %v2582 = vsel %vm903, %v2579, %v2581
      %v2583 = vrot.slane %v2089, 4
      %v2584 = vrot.slane %v2090, 4
      %v2585 = vsel %vm903, %v2583, %v2584
      %v2586 = vrot.slane %v2091, 4
      %v2587 = vsel %vm903, %v2584, %v2586
      %v2620 = vmax.f32 %v2476, %v2510
      %v2621 = vmax.f32 %v2477, %v2512
      %v2622 = vmax.f32 %v2478, %v2515
      %v2623 = vmax.f32 %v2479, %v2517
      %v2624 = vmax.f32 %v2480, %v2520
      %v2625 = vmax.f32 %v2481, %v2522
      %v2626 = vmax.f32 %v2482, %v2525
      %v2627 = vmax.f32 %v2483, %v2527
      %v2628 = vmax.f32 %v2484, %v2530
      %v2629 = vmax.f32 %v2485, %v2532
      %v2630 = vmax.f32 %v2486, %v2535
      %v2631 = vmax.f32 %v2487, %v2537
      %v2632 = vmax.f32 %v2488, %v2540
      %v2633 = vmax.f32 %v2489, %v2542
      %v2634 = vmax.f32 %v2490, %v2545
      %v2635 = vmax.f32 %v2491, %v2547
      %v2636 = vmax.f32 %v2492, %v2550
      %v2637 = vmax.f32 %v2493, %v2552
      %v2638 = vmax.f32 %v2494, %v2555
      %v2639 = vmax.f32 %v2495, %v2557
      %v2640 = vmax.f32 %v2496, %v2560
      %v2641 = vmax.f32 %v2497, %v2562
      %v2642 = vmax.f32 %v2498, %v2565
      %v2643 = vmax.f32 %v2499, %v2567
      %v2644 = vmax.f32 %v2500, %v2570
      %v2645 = vmax.f32 %v2501, %v2572
      %v2646 = vmax.f32 %v2502, %v2575
      %v2647 = vmax.f32 %v2503, %v2577
      %v2648 = vmax.f32 %v2504, %v2580
      %v2649 = vmax.f32 %v2505, %v2582
      %v2650 = vmax.f32 %v2506, %v2585
      %v2651 = vmax.f32 %v2507, %v2587
      %2652 = vst.msk [vmem:[%s147] sm:$0xff] %vm180, %v2620
      %2653 = vst.msk [vmem:[%s147 + $0x8] sm:$0xff] %vm180, %v2621
      %2654 = vst.msk [vmem:[%s147 + $0x10] sm:$0xff] %vm180, %v2622
      %2655 = vst.msk [vmem:[%s147 + $0x18] sm:$0xff] %vm180, %v2623
      %2656 = vst.msk [vmem:[%s147 + $0x20] sm:$0xff] %vm180, %v2624
      %2657 = vst.msk [vmem:[%s147 + $0x28] sm:$0xff] %vm180, %v2625
      %2658 = vst.msk [vmem:[%s147 + $0x30] sm:$0xff] %vm180, %v2626
      %2659 = vst.msk [vmem:[%s147 + $0x38] sm:$0xff] %vm180, %v2627
      %2660 = vst.msk [vmem:[%s147 + $0x40] sm:$0xff] %vm180, %v2628
      %2661 = vst.msk [vmem:[%s147 + $0x48] sm:$0xff] %vm180, %v2629
      %2662 = vst.msk [vmem:[%s147 + $0x50] sm:$0xff] %vm180, %v2630
      %2663 = vst.msk [vmem:[%s147 + $0x58] sm:$0xff] %vm180, %v2631
      %2664 = vst.msk [vmem:[%s147 + $0x60] sm:$0xff] %vm180, %v2632
      %2665 = vst.msk [vmem:[%s147 + $0x68] sm:$0xff] %vm180, %v2633
      %2666 = vst.msk [vmem:[%s147 + $0x70] sm:$0xff] %vm180, %v2634
      %2667 = vst.msk [vmem:[%s147 + $0x78] sm:$0xff] %vm180, %v2635
      %2668 = vst.msk [vmem:[%s147 + $0x80] sm:$0xff] %vm180, %v2636
      %2669 = vst.msk [vmem:[%s147 + $0x88] sm:$0xff] %vm180, %v2637
      %2670 = vst.msk [vmem:[%s147 + $0x90] sm:$0xff] %vm180, %v2638
      %2671 = vst.msk [vmem:[%s147 + $0x98] sm:$0xff] %vm180, %v2639
      %2672 = vst.msk [vmem:[%s147 + $0xa0] sm:$0xff] %vm180, %v2640
      %2673 = vst.msk [vmem:[%s147 + $0xa8] sm:$0xff] %vm180, %v2641
      %2674 = vst.msk [vmem:[%s147 + $0xb0] sm:$0xff] %vm180, %v2642
      %2675 = vst.msk [vmem:[%s147 + $0xb8] sm:$0xff] %vm180, %v2643
      %2676 = vst.msk [vmem:[%s147 + $0xc0] sm:$0xff] %vm180, %v2644
      %2677 = vst.msk [vmem:[%s147 + $0xc8] sm:$0xff] %vm180, %v2645
      %2678 = vst.msk [vmem:[%s147 + $0xd0] sm:$0xff] %vm180, %v2646
      %2679 = vst.msk [vmem:[%s147 + $0xd8] sm:$0xff] %vm180, %v2647
      %2680 = vst.msk [vmem:[%s147 + $0xe0] sm:$0xff] %vm180, %v2648
      %2681 = vst.msk [vmem:[%s147 + $0xe8] sm:$0xff] %vm180, %v2649
      %2682 = vst.msk [vmem:[%s147 + $0xf0] sm:$0xff] %vm180, %v2650
      %2683 = vst.msk [vmem:[%s147 + $0xf8] sm:$0xff] %vm180, %v2651
      %s2684 = scalar_lea.vmem %s147, 256
      %2685 = vst.msk [vmem:[%s2684] sm:$0xff] %vm180, %v1818
      %2686 = vst.msk [vmem:[%s2684 + $0x8] sm:$0xff] %vm180, %v1819
      %2687 = vst.msk [vmem:[%s2684 + $0x10] sm:$0xff] %vm180, %v1820
      %2688 = vst.msk [vmem:[%s2684 + $0x18] sm:$0xff] %vm180, %v1821
      %2689 = vst.msk [vmem:[%s2684 + $0x20] sm:$0xff] %vm180, %v1822
      %2690 = vst.msk [vmem:[%s2684 + $0x28] sm:$0xff] %vm180, %v1823
      %2691 = vst.msk [vmem:[%s2684 + $0x30] sm:$0xff] %vm180, %v1824
      %2692 = vst.msk [vmem:[%s2684 + $0x38] sm:$0xff] %vm180, %v1825
      %2693 = vst.msk [vmem:[%s2684 + $0x40] sm:$0xff] %vm180, %v1826
      %2694 = vst.msk [vmem:[%s2684 + $0x48] sm:$0xff] %vm180, %v1827
      %2695 = vst.msk [vmem:[%s2684 + $0x50] sm:$0xff] %vm180, %v1828
      %2696 = vst.msk [vmem:[%s2684 + $0x58] sm:$0xff] %vm180, %v1829
      %2697 = vst.msk [vmem:[%s2684 + $0x60] sm:$0xff] %vm180, %v1830
      %2698 = vst.msk [vmem:[%s2684 + $0x68] sm:$0xff] %vm180, %v1831
      %2699 = vst.msk [vmem:[%s2684 + $0x70] sm:$0xff] %vm180, %v1832
      %2700 = vst.msk [vmem:[%s2684 + $0x78] sm:$0xff] %vm180, %v1833
      %2701 = vst.msk [vmem:[%s2684 + $0x80] sm:$0xff] %vm180, %v1834
      %2702 = vst.msk [vmem:[%s2684 + $0x88] sm:$0xff] %vm180, %v1835
      %2703 = vst.msk [vmem:[%s2684 + $0x90] sm:$0xff] %vm180, %v1836
      %2704 = vst.msk [vmem:[%s2684 + $0x98] sm:$0xff] %vm180, %v1837
      %2705 = vst.msk [vmem:[%s2684 + $0xa0] sm:$0xff] %vm180, %v1838
      %2706 = vst.msk [vmem:[%s2684 + $0xa8] sm:$0xff] %vm180, %v1839
      %2707 = vst.msk [vmem:[%s2684 + $0xb0] sm:$0xff] %vm180, %v1840
      %2708 = vst.msk [vmem:[%s2684 + $0xb8] sm:$0xff] %vm180, %v1841
      %2709 = vst.msk [vmem:[%s2684 + $0xc0] sm:$0xff] %vm180, %v1842
      %2710 = vst.msk [vmem:[%s2684 + $0xc8] sm:$0xff] %vm180, %v1843
      %2711 = vst.msk [vmem:[%s2684 + $0xd0] sm:$0xff] %vm180, %v1844
      %2712 = vst.msk [vmem:[%s2684 + $0xd8] sm:$0xff] %vm180, %v1845
      %2713 = vst.msk [vmem:[%s2684 + $0xe0] sm:$0xff] %vm180, %v1846
      %2714 = vst.msk [vmem:[%s2684 + $0xe8] sm:$0xff] %vm180, %v1847
      %2715 = vst.msk [vmem:[%s2684 + $0xf0] sm:$0xff] %vm180, %v1848
      %2716 = vst.msk [vmem:[%s2684 + $0xf8] sm:$0xff] %vm180, %v1849
      %s2717 = scalar_lea.vmem %s147, 512
      %2718 = vst.msk [vmem:[%s2717] sm:$0xff] %vm180, %v1016
      %2719 = vst.msk [vmem:[%s2717 + $0x8] sm:$0xff] %vm180, %v1017
      %2720 = vst.msk [vmem:[%s2717 + $0x10] sm:$0xff] %vm180, %v1018
      %2721 = vst.msk [vmem:[%s2717 + $0x18] sm:$0xff] %vm180, %v1019
      %2722 = vst.msk [vmem:[%s2717 + $0x20] sm:$0xff] %vm180, %v1020
      %2723 = vst.msk [vmem:[%s2717 + $0x28] sm:$0xff] %vm180, %v1021
      %2724 = vst.msk [vmem:[%s2717 + $0x30] sm:$0xff] %vm180, %v1022
      %2725 = vst.msk [vmem:[%s2717 + $0x38] sm:$0xff] %vm180, %v1023
      %2726 = vst.msk [vmem:[%s2717 + $0x40] sm:$0xff] %vm180, %v1024
      %2727 = vst.msk [vmem:[%s2717 + $0x48] sm:$0xff] %vm180, %v1025
      %2728 = vst.msk [vmem:[%s2717 + $0x50] sm:$0xff] %vm180, %v1026
      %2729 = vst.msk [vmem:[%s2717 + $0x58] sm:$0xff] %vm180, %v1027
      %2730 = vst.msk [vmem:[%s2717 + $0x60] sm:$0xff] %vm180, %v1028
      %2731 = vst.msk [vmem:[%s2717 + $0x68] sm:$0xff] %vm180, %v1029
      %2732 = vst.msk [vmem:[%s2717 + $0x70] sm:$0xff] %vm180, %v1030
      %2733 = vst.msk [vmem:[%s2717 + $0x78] sm:$0xff] %vm180, %v1031
      %2734 = vst.msk [vmem:[%s2717 + $0x80] sm:$0xff] %vm180, %v1032
      %2735 = vst.msk [vmem:[%s2717 + $0x88] sm:$0xff] %vm180, %v1033
      %2736 = vst.msk [vmem:[%s2717 + $0x90] sm:$0xff] %vm180, %v1034
      %2737 = vst.msk [vmem:[%s2717 + $0x98] sm:$0xff] %vm180, %v1035
      %2738 = vst.msk [vmem:[%s2717 + $0xa0] sm:$0xff] %vm180, %v1036
      %2739 = vst.msk [vmem:[%s2717 + $0xa8] sm:$0xff] %vm180, %v1037
      %2740 = vst.msk [vmem:[%s2717 + $0xb0] sm:$0xff] %vm180, %v1038
      %2741 = vst.msk [vmem:[%s2717 + $0xb8] sm:$0xff] %vm180, %v1039
      %2742 = vst.msk [vmem:[%s2717 + $0xc0] sm:$0xff] %vm180, %v1040
      %2743 = vst.msk [vmem:[%s2717 + $0xc8] sm:$0xff] %vm180, %v1041
      %2744 = vst.msk [vmem:[%s2717 + $0xd0] sm:$0xff] %vm180, %v1042
      %2745 = vst.msk [vmem:[%s2717 + $0xd8] sm:$0xff] %vm180, %v1043
      %2746 = vst.msk [vmem:[%s2717 + $0xe0] sm:$0xff] %vm180, %v1044
      %2747 = vst.msk [vmem:[%s2717 + $0xe8] sm:$0xff] %vm180, %v1045
      %2748 = vst.msk [vmem:[%s2717 + $0xf0] sm:$0xff] %vm180, %v1046
      %2749 = vst.msk [vmem:[%s2717 + $0xf8] sm:$0xff] %vm180, %v1047
      %s2750 = scalar_lea.vmem %s147, 768
      %2751 = vst.msk [vmem:[%s2750] sm:$0xff] %vm180, %v148
      %2752 = vst.msk [vmem:[%s2750 + $0x8] sm:$0xff] %vm180, %v149
      %2753 = vst.msk [vmem:[%s2750 + $0x10] sm:$0xff] %vm180, %v150
      %2754 = vst.msk [vmem:[%s2750 + $0x18] sm:$0xff] %vm180, %v151
      %2755 = vst.msk [vmem:[%s2750 + $0x20] sm:$0xff] %vm180, %v152
      %2756 = vst.msk [vmem:[%s2750 + $0x28] sm:$0xff] %vm180, %v153
      %2757 = vst.msk [vmem:[%s2750 + $0x30] sm:$0xff] %vm180, %v154
      %2758 = vst.msk [vmem:[%s2750 + $0x38] sm:$0xff] %vm180, %v155
      %2759 = vst.msk [vmem:[%s2750 + $0x40] sm:$0xff] %vm180, %v156
      %2760 = vst.msk [vmem:[%s2750 + $0x48] sm:$0xff] %vm180, %v157
      %2761 = vst.msk [vmem:[%s2750 + $0x50] sm:$0xff] %vm180, %v158
      %2762 = vst.msk [vmem:[%s2750 + $0x58] sm:$0xff] %vm180, %v159
      %2763 = vst.msk [vmem:[%s2750 + $0x60] sm:$0xff] %vm180, %v160
      %2764 = vst.msk [vmem:[%s2750 + $0x68] sm:$0xff] %vm180, %v161
      %2765 = vst.msk [vmem:[%s2750 + $0x70] sm:$0xff] %vm180, %v162
      %2766 = vst.msk [vmem:[%s2750 + $0x78] sm:$0xff] %vm180, %v163
      %2767 = vst.msk [vmem:[%s2750 + $0x80] sm:$0xff] %vm180, %v164
      %2768 = vst.msk [vmem:[%s2750 + $0x88] sm:$0xff] %vm180, %v165
      %2769 = vst.msk [vmem:[%s2750 + $0x90] sm:$0xff] %vm180, %v166
      %2770 = vst.msk [vmem:[%s2750 + $0x98] sm:$0xff] %vm180, %v167
      %2771 = vst.msk [vmem:[%s2750 + $0xa0] sm:$0xff] %vm180, %v168
      %2772 = vst.msk [vmem:[%s2750 + $0xa8] sm:$0xff] %vm180, %v169
      %2773 = vst.msk [vmem:[%s2750 + $0xb0] sm:$0xff] %vm180, %v170
      %2774 = vst.msk [vmem:[%s2750 + $0xb8] sm:$0xff] %vm180, %v171
      %2775 = vst.msk [vmem:[%s2750 + $0xc0] sm:$0xff] %vm180, %v172
      %2776 = vst.msk [vmem:[%s2750 + $0xc8] sm:$0xff] %vm180, %v173
      %2777 = vst.msk [vmem:[%s2750 + $0xd0] sm:$0xff] %vm180, %v174
      %2778 = vst.msk [vmem:[%s2750 + $0xd8] sm:$0xff] %vm180, %v175
      %2779 = vst.msk [vmem:[%s2750 + $0xe0] sm:$0xff] %vm180, %v176
      %2780 = vst.msk [vmem:[%s2750 + $0xe8] sm:$0xff] %vm180, %v177
      %2781 = vst.msk [vmem:[%s2750 + $0xf0] sm:$0xff] %vm180, %v178
      %2782 = vst.msk [vmem:[%s2750 + $0xf8] sm:$0xff] %vm180, %v179
      %p2783 = scmp.lt.s32.totalorder %s16, 1
      %s2784 = scalar_select %p2783, %s16, 1
      %p2785 = scmp.lt.s32.totalorder %s17, 0
      %s2786 = scalar_select %p2785, %s17, 0
      %s2787 = smul.addr %s2784, 128
      %s2788 = sadd.s32 %s2786, %s2787
      %s2789 = smul.addr %s2788, 8
      %s2790 = scalar_lea.vmem %s1, %s2789
      // Predicated region
      $region25: #{spp_block_forward.1} parent=23 // pred_check
        %p2791 = pneg %p72
      $region26: #{spp_block_forward.1} parent=23 // pred_check_branch
        %2793 = sbr.rel (%p2791) target = $region28
      $region27: #{spp_block_forward.1} parent=23 // pred_region
        _
      $region28: #{spp_block_forward.1} parent=23 // pred_fallthru
        _
    $region24: #{spp_block_forward.1} parent=5 // pred_fallthru
      _
    %p2794 = scmp.le.s32.totalorder 2, %s7
    // Predicated region
    $region29: #{spp_block_forward.1} parent=5 // pred_check
      %p2795 = pneg %p2794
    $region30: #{spp_block_forward.1} parent=5 // pred_check_branch
      %2797 = sbr.rel (%p2795) target = $region32
    $region31: #{spp_block_forward.1} parent=5 // pred_region
      %s2798 = ssub.s32 %s7, 2
      // Predicated region
      $region33: #{spp_block_forward.1} parent=31 // pred_check
        %p2799 = pneg %p78
      $region34: #{spp_block_forward.1} parent=31 // pred_check_branch
        %2801 = sbr.rel (%p2799) target = $region36
      $region35: #{spp_block_forward.1} parent=31 // pred_region
        %p2802 = scmp.lt.s32.totalorder %s18, 1
        %s2803 = scalar_select %p2802, %s18, 1
        %p2804 = scmp.lt.s32.totalorder %s19, 0
        %s2805 = scalar_select %p2804, %s19, 0
        %s2806 = smul.addr %s2803, 128
        %s2807 = sadd.s32 %s2805, %s2806
        %s2808 = smul.addr %s2807, 8
        %s2809 = scalar_lea.vmem %s1, %s2808
      $region36: #{spp_block_forward.1} parent=31 // pred_fallthru
        _
    $region32: #{spp_block_forward.1} parent=5 // pred_fallthru
      _
  $region6: #{spp_block_forward.1} parent=0 // loop_footer
    %s11 = sadd.s32 1, %s7
  $region7: #{spp_block_forward.1} parent=0 // loop_footer_branch
    %6 = sbr.rel target = $region3
  $region8: #{spp_block_forward.1} parent=0 // loop_exit
    _

</llo_original>
